<compile_context>
chip_gen: v5e
topology: v5e:2x2
jax: 0.10.0
libtpu: 0.0.40
codegen_flags: <defaults>
</compile_context>

<pallas_src>
import jax
import jax.numpy as jnp
from jax.experimental import pallas as pl
from jax.experimental.pallas import tpu as pltpu


H1 = 512
H2 = 256
OUT_LANES = 128  # lane-dense output width


def _round_up(x, m):
    return (x + m - 1) // m * m


def _cdiv(a, b):
    return (a + b - 1) // b


def _leaky_relu(x, slope=0.2):
    return jnp.where(x > 0, x, slope * x)


def _tpu_vmem_capacity():
    try:
        return int(pltpu.get_tpu_info().vmem_capacity_bytes)
    except Exception:
        return 64 << 20  # conservative fallback (v7x per-TC VMEM)


def discriminator_kernel(x_ref, w1_ref, b1_ref, w2_ref, b2_ref, w3_ref, b3_ref,
                         out_ref, acc_ref):
    # x_ref:  [TB, TK] bf16     w1_ref: [TK, 512] bf16
    # b1_ref: [1, 512] f32      w2_ref: [512, 256] bf16
    # b2_ref: [1, 256] f32      w3_ref: [1, 256] f32 (output layer as a row)
    # b3_ref: [1, 1] f32 in SMEM
    # out_ref: [TB, 128] f32 (lane-dense, result broadcast across lanes)
    # acc_ref: [TB, 512] f32 scratch
    k = pl.program_id(1)
    nk = pl.num_programs(1)

    @pl.when(k == 0)
    def _():
        acc_ref[...] = jnp.zeros_like(acc_ref)

    # Layer 1 partial product over this K tile (bf16 MXU, f32 accumulate).
    acc_ref[...] += jnp.dot(x_ref[...], w1_ref[...],
                            preferred_element_type=jnp.float32)

    @pl.when(k == nk - 1)
    def _():
        # Fused bias + LeakyReLU + bf16 cast (no separate f32 h1 staging pass).
        h1 = _leaky_relu(acc_ref[...] + b1_ref[...]).astype(jnp.bfloat16)

        h2 = jnp.dot(h1, w2_ref[...], preferred_element_type=jnp.float32)
        h2 = _leaky_relu(h2 + b2_ref[...])

        # Output layer (256 -> 1): VPU multiply + XLU lane reduce instead of an
        # N=1 MXU matmul.  b3 comes from the SMEM scalar slot.
        h3 = jnp.sum(h2 * w3_ref[...], axis=-1, keepdims=True) + b3_ref[0, 0]
        sig = jax.nn.sigmoid(h3)
        # Lane-dense, unmasked store (wrapper keeps column 0).
        out_ref[...] = jnp.broadcast_to(sig, out_ref.shape)


def _plan_tiling(d_in, vmem_cap):
    """Pick TK / padded D_in generation-aware.

    If the (padded) bf16 w1 fits in ~VMEM/4, keep it fully VMEM-resident
    (single K step, constant index map -> streamed from HBM once).  Otherwise
    tile K with a large TK chosen to minimise zero-padding of d_in.
    """
    d_res = _round_up(d_in, 128)
    w1_resident_bytes = d_res * H1 * 2  # bf16
    if w1_resident_bytes <= vmem_cap // 4:
        tk = d_res
        nk = 1
    else:
        tk_max = 8192 if vmem_cap >= (96 << 20) else 4096
        nk = _cdiv(d_in, tk_max)
        tk = _round_up(_cdiv(d_in, nk), 128)
    d_pad = nk * tk
    return tk, d_pad, nk


def prepare_params(params, d_in, vmem_cap=None):
    """One-time param prep: pad + bf16-cast weights, pick tiling (hoisted out of
    the per-call forward path)."""
    w1, b1, w2, b2, w3, b3 = params
    if vmem_cap is None:
        vmem_cap = _tpu_vmem_capacity()
    tk, d_pad, nk = _plan_tiling(d_in, vmem_cap)

    w1p = jnp.pad(w1, ((0, d_pad - d_in), (0, 0))) if d_pad != d_in else w1
    return {
        "w1": w1p.astype(jnp.bfloat16),
        "b1": b1.reshape(1, H1).astype(jnp.float32),
        "w2": w2.astype(jnp.bfloat16),
        "b2": b2.reshape(1, H2).astype(jnp.float32),
        "w3": w3.reshape(1, H2).astype(jnp.float32),
        "b3": b3.reshape(1, 1).astype(jnp.float32),
        "d_in": d_in, "d_pad": d_pad, "tk": tk, "nk": nk,
        "vmem_cap": vmem_cap,
    }


def discriminator_forward(img, prepped):
    """img: [B, C, H, W] float32 -> validity [B, 1] float32."""
    B = img.shape[0]
    d_in, d_pad, TK = prepped["d_in"], prepped["d_pad"], prepped["tk"]

    # Activations shipped as bf16 (halves x HBM traffic; MXU takes bf16 anyway).
    x = img.reshape(B, -1).astype(jnp.bfloat16)  # torch img.view(B, -1)

    # Batch tile: >=8 sublanes for MXU occupancy, up to 128 rows per tile.
    TB = min(128, _round_up(max(B, 1), 8))
    B_pad = _round_up(B, TB)

    if B_pad != B or d_pad != d_in:
        x = jnp.pad(x, ((0, B_pad - B), (0, d_pad - d_in)))

    grid = (B_pad // TB, d_pad // TK)

    # VMEM footprint estimate (double-buffered inputs/outputs) -> scoped limit.
    vmem_est = (2 * TB * TK * 2            # x double-buffer (bf16)
                + 2 * TK * H1 * 2          # w1 buffers (bf16)
                + 2 * H1 * H2 * 2          # w2 buffers (bf16)
                + TB * H1 * 4              # f32 accumulator scratch
                + 2 * TB * OUT_LANES * 4   # output double-buffer
                + 4 * (H1 + 2 * H2) * 4)   # biases / w3 row
    vmem_limit = min(int(0.9 * prepped["vmem_cap"]),
                     max(vmem_est + (4 << 20), 32 << 20))

    out = pl.pallas_call(
        discriminator_kernel,
        out_shape=jax.ShapeDtypeStruct((B_pad, OUT_LANES), jnp.float32),
        grid_spec=pltpu.PrefetchScalarGridSpec(
            num_scalar_prefetch=0,
            grid=grid,
            in_specs=[
                pl.BlockSpec((TB, TK), lambda i, k: (i, k)),     # x tile
                pl.BlockSpec((TK, H1), lambda i, k: (k, 0)),     # w1 K-tile (resident if nk==1)
                pl.BlockSpec((1, H1), lambda i, k: (0, 0)),      # b1 (resident)
                pl.BlockSpec((H1, H2), lambda i, k: (0, 0)),     # w2 (resident)
                pl.BlockSpec((1, H2), lambda i, k: (0, 0)),      # b2 (resident)
                pl.BlockSpec((1, H2), lambda i, k: (0, 0)),      # w3 row (resident)
                pl.BlockSpec(memory_space=pltpu.MemorySpace.SMEM),  # b3 scalar
            ],
            out_specs=pl.BlockSpec((TB, OUT_LANES), lambda i, k: (i, 0)),
            scratch_shapes=[pltpu.VMEM((TB, H1), jnp.float32)],
        ),
        compiler_params=pltpu.CompilerParams(
            dimension_semantics=("parallel", "arbitrary"),
            vmem_limit_bytes=vmem_limit),
    )(x, prepped["w1"], prepped["b1"], prepped["w2"], prepped["b2"],
      prepped["w3"], prepped["b3"])

    return out[:B, :1]


def init_params(key, d_in):
    """Deterministic PyTorch-Linear-style init: U(-1/sqrt(fan_in), 1/sqrt(fan_in))."""
    dims = [(d_in, H1), (H1, H2), (H2, 1)]
    params = []
    for (fan_in, fan_out) in dims:
        key, kw, kb = jax.random.split(key, 3)
        bound = 1.0 / (fan_in ** 0.5)
        w = jax.random.uniform(kw, (fan_in, fan_out), jnp.float32, -bound, bound)
        b = jax.random.uniform(kb, (1, fan_out), jnp.float32, -bound, bound)
        params += [w, b]
    return tuple(params)


def reference_forward_f32(img, params):
    """Pure f32 reference (exact PyTorch semantics)."""
    w1, b1, w2, b2, w3, b3 = params
    x = img.reshape(img.shape[0], -1)
    h = _leaky_relu(x @ w1 + b1)
    h = _leaky_relu(h @ w2 + b2)
    return jax.nn.sigmoid(h @ w3 + b3)


def reference_forward_bf16(img, params):
    """Reference using the same bf16-operand / f32-accumulate arithmetic as the kernel."""
    w1, b1, w2, b2, w3, b3 = params
    x = img.reshape(img.shape[0], -1)
    h = jnp.dot(x.astype(jnp.bfloat16), w1.astype(jnp.bfloat16),
                preferred_element_type=jnp.float32)
    h = _leaky_relu(h + b1)
    h = jnp.dot(h.astype(jnp.bfloat16), w2.astype(jnp.bfloat16),
                preferred_element_type=jnp.float32)
    h = _leaky_relu(h + b2)
    h3 = jnp.sum(h * w3.reshape(1, -1), axis=-1, keepdims=True) + b3
    return jax.nn.sigmoid(h3)


if __name__ == "__main__":
    # Small shapes consistent with the module: batch=2, channels=4, img_size=16.
    B, C, H, W = 2, 4, 16, 16
    d_in = C * H * W  # 1024

    key = jax.random.PRNGKey(0)
    key, kimg = jax.random.split(key)
    img = jax.random.normal(kimg, (B, C, H, W), jnp.float32)

    params = init_params(key, d_in)

    # One-time weight prep (pad + bf16 cast + tiling plan) hoisted out of forward.
    prepped = prepare_params(params, d_in)

    forward = jax.jit(lambda im: discriminator_forward(im, prepped))
    out = jax.block_until_ready(forward(img))
    assert out.shape == (B, 1), out.shape

    ref_bf16 = reference_forward_bf16(img, params)
    ref_f32 = reference_forward_f32(img, params)
    assert jnp.allclose(out, ref_bf16, atol=5e-3, rtol=5e-3), (out, ref_bf16)
    assert jnp.allclose(out, ref_f32, atol=3e-2, rtol=3e-2), (out, ref_f32)

    print("KERNEL_OK")
</pallas_src>

<mosaic_0001>
module attributes {stable_mosaic.version = 11 : i64} {
  func.func @discriminator_kernel(%arg0: i32, %arg1: i32, %arg2: memref<8x1024xbf16, #tpu.memory_space<vmem>>, %arg3: memref<1024x512xbf16, #tpu.memory_space<vmem>>, %arg4: memref<1x512xf32, #tpu.memory_space<vmem>>, %arg5: memref<512x256xbf16, #tpu.memory_space<vmem>>, %arg6: memref<1x256xf32, #tpu.memory_space<vmem>>, %arg7: memref<1x256xf32, #tpu.memory_space<vmem>>, %arg8: memref<1x1xf32, #tpu.memory_space<smem>>, %arg9: memref<8x128xf32, #tpu.memory_space<vmem>>, %arg10: memref<8x512xf32, #tpu.memory_space<vmem>>) attributes {dimension_semantics = [#tpu.dimension_semantics<parallel>, #tpu.dimension_semantics<arbitrary>], iteration_bounds = array<i64: 1, 1>, scalar_prefetch = 0 : i64, scratch_operands = 1 : i64, tpu.core_type = #tpu.core_type<tc>, window_params = [{transform_indices = @transform_0, window_bounds = array<i64: 8, 1024>}, {transform_indices = @transform_1, window_bounds = array<i64: 1024, 512>}, {pipeline_mode = #tpu.pipeline_mode<synchronous>, transform_indices = @transform_2, window_bounds = array<i64: 1, 512>}, {pipeline_mode = #tpu.pipeline_mode<synchronous>, transform_indices = @transform_3, window_bounds = array<i64: 512, 256>}, {pipeline_mode = #tpu.pipeline_mode<synchronous>, transform_indices = @transform_4, window_bounds = array<i64: 1, 256>}, {pipeline_mode = #tpu.pipeline_mode<synchronous>, transform_indices = @transform_5, window_bounds = array<i64: 1, 256>}, {transform_indices = @transform_6, window_bounds = array<i64: 1, 1>}, {transform_indices = @transform_7, window_bounds = array<i64: 8, 128>}]} {
    %c0_i32 = arith.constant 0 : i32
    %0 = arith.cmpi eq, %arg1, %c0_i32 : i32
    %1 = arith.extui %0 : i1 to i32
    %c0_i32_0 = arith.constant 0 : i32
    %2 = arith.cmpi ne, %1, %c0_i32_0 : i32
    scf.if %2 {
      %cst_10 = arith.constant 0.000000e+00 : f32
      %12 = vector.broadcast %cst_10 : f32 to vector<8x512xf32>
      %c0_11 = arith.constant 0 : index
      %c0_12 = arith.constant 0 : index
      %13 = vector.load %arg10[%c0_11, %c0_12] : memref<8x512xf32, #tpu.memory_space<vmem>>, vector<8x512xf32>
      tpu.vector_store %arg10[%c0_11, %c0_12], %12 {strides = array<i32>} : memref<8x512xf32, #tpu.memory_space<vmem>>, vector<8x512xf32>,
    } else {
    }
    %c0 = arith.constant 0 : index
    %c0_1 = arith.constant 0 : index
    %3 = vector.load %arg10[%c0, %c0_1] : memref<8x512xf32, #tpu.memory_space<vmem>>, vector<8x512xf32>
    %c0_2 = arith.constant 0 : index
    %c0_3 = arith.constant 0 : index
    %4 = vector.load %arg2[%c0_2, %c0_3] : memref<8x1024xbf16, #tpu.memory_space<vmem>>, vector<8x1024xbf16>
    %c0_4 = arith.constant 0 : index
    %c0_5 = arith.constant 0 : index
    %5 = vector.load %arg3[%c0_4, %c0_5] : memref<1024x512xbf16, #tpu.memory_space<vmem>>, vector<1024x512xbf16>
    %cst = arith.constant dense<0.000000e+00> : vector<8x512xf32>
    %6 = tpu.matmul %4, %5, %cst {dimension_numbers = #tpu.dot_dimension_numbers<[1], [0], [0], [1], [0, 0, 1, 1], [], []>} : vector<8x1024xbf16>, vector<1024x512xbf16>, vector<8x512xf32> -> vector<8x512xf32>
    %7 = arith.addf %3, %6 : vector<8x512xf32>
    %c0_6 = arith.constant 0 : index
    %c0_7 = arith.constant 0 : index
    %8 = vector.load %arg10[%c0_6, %c0_7] : memref<8x512xf32, #tpu.memory_space<vmem>>, vector<8x512xf32>
    tpu.vector_store %arg10[%c0_6, %c0_7], %7 {strides = array<i32>} : memref<8x512xf32, #tpu.memory_space<vmem>>, vector<8x512xf32>,
    %c0_i32_8 = arith.constant 0 : i32
    %9 = arith.cmpi eq, %arg1, %c0_i32_8 : i32
    %10 = arith.extui %9 : i1 to i32
    %c0_i32_9 = arith.constant 0 : i32
    %11 = arith.cmpi ne, %10, %c0_i32_9 : i32
    scf.if %11 {
      %c0_10 = arith.constant 0 : index
      %c0_11 = arith.constant 0 : index
      %12 = vector.load %arg10[%c0_10, %c0_11] : memref<8x512xf32, #tpu.memory_space<vmem>>, vector<8x512xf32>
      %c0_12 = arith.constant 0 : index
      %c0_13 = arith.constant 0 : index
      %13 = vector.load %arg4[%c0_12, %c0_13] : memref<1x512xf32, #tpu.memory_space<vmem>>, vector<1x512xf32>
      %14 = vector.broadcast %13 : vector<1x512xf32> to vector<8x512xf32>
      %15 = arith.addf %12, %14 : vector<8x512xf32>
      %cst_14 = arith.constant 0.000000e+00 : f32
      %16 = vector.broadcast %cst_14 : f32 to vector<8x512xf32>
      %17 = arith.cmpf ogt, %15, %16 : vector<8x512xf32>
      %cst_15 = arith.constant 2.000000e-01 : f32
      %18 = vector.broadcast %cst_15 : f32 to vector<8x512xf32>
      %19 = arith.mulf %18, %15 : vector<8x512xf32>
      %20 = arith.select %17, %15, %19 : vector<8x512xi1>, vector<8x512xf32>
      %21 = arith.truncf %20 : vector<8x512xf32> to vector<8x512xbf16>
      %c0_16 = arith.constant 0 : index
      %c0_17 = arith.constant 0 : index
      %22 = vector.load %arg5[%c0_16, %c0_17] : memref<512x256xbf16, #tpu.memory_space<vmem>>, vector<512x256xbf16>
      %cst_18 = arith.constant dense<0.000000e+00> : vector<8x256xf32>
      %23 = tpu.matmul %21, %22, %cst_18 {dimension_numbers = #tpu.dot_dimension_numbers<[1], [0], [0], [1], [0, 0, 1, 1], [], []>} : vector<8x512xbf16>, vector<512x256xbf16>, vector<8x256xf32> -> vector<8x256xf32>
      %c0_19 = arith.constant 0 : index
      %c0_20 = arith.constant 0 : index
      %24 = vector.load %arg6[%c0_19, %c0_20] : memref<1x256xf32, #tpu.memory_space<vmem>>, vector<1x256xf32>
      %25 = vector.broadcast %24 : vector<1x256xf32> to vector<8x256xf32>
      %26 = arith.addf %23, %25 : vector<8x256xf32>
      %cst_21 = arith.constant 0.000000e+00 : f32
      %27 = vector.broadcast %cst_21 : f32 to vector<8x256xf32>
      %28 = arith.cmpf ogt, %26, %27 : vector<8x256xf32>
      %cst_22 = arith.constant 2.000000e-01 : f32
      %29 = vector.broadcast %cst_22 : f32 to vector<8x256xf32>
      %30 = arith.mulf %29, %26 : vector<8x256xf32>
      %31 = arith.select %28, %26, %30 : vector<8x256xi1>, vector<8x256xf32>
      %c0_23 = arith.constant 0 : index
      %c0_24 = arith.constant 0 : index
      %32 = vector.load %arg7[%c0_23, %c0_24] : memref<1x256xf32, #tpu.memory_space<vmem>>, vector<1x256xf32>
      %33 = vector.broadcast %32 : vector<1x256xf32> to vector<8x256xf32>
      %34 = arith.mulf %31, %33 : vector<8x256xf32>
      %cst_25 = arith.constant dense<0.000000e+00> : vector<8xf32>
      %35 = vector.multi_reduction <add>, %34, %cst_25 [1] : vector<8x256xf32> to vector<8xf32>
      %36 = vector.shape_cast %35 : vector<8xf32> to vector<8x1xf32>
      %c0_26 = arith.constant 0 : index
      %c0_27 = arith.constant 0 : index
      %37 = memref.load %arg8[%c0_26, %c0_27] : memref<1x1xf32, #tpu.memory_space<smem>>
      %38 = vector.broadcast %37 : f32 to vector<8x1xf32>
      %39 = arith.addf %36, %38 : vector<8x1xf32>
      %40 = arith.negf %39 : vector<8x1xf32>
      %41 = math.exp %40 : vector<8x1xf32>
      %cst_28 = arith.constant 1.000000e+00 : f32
      %42 = vector.broadcast %cst_28 : f32 to vector<8x1xf32>
      %43 = arith.addf %42, %41 : vector<8x1xf32>
      %44 = arith.divf %42, %43 : vector<8x1xf32>
      %45 = vector.shape_cast %44 : vector<8x1xf32> to vector<8x1xf32>
      %46 = vector.broadcast %45 : vector<8x1xf32> to vector<8x128xf32>
      %c0_29 = arith.constant 0 : index
      %c0_30 = arith.constant 0 : index
      %47 = vector.load %arg9[%c0_29, %c0_30] : memref<8x128xf32, #tpu.memory_space<vmem>>, vector<8x128xf32>
      tpu.vector_store %arg9[%c0_29, %c0_30], %46 {strides = array<i32>} : memref<8x128xf32, #tpu.memory_space<vmem>>, vector<8x128xf32>,
    } else {
    }
    return
  }
  func.func @transform_0(%arg0: i32, %arg1: i32) -> (i32, i32) {
    %c0_i32 = arith.constant 0 : i32
    return %arg0, %arg1 : i32, i32
  }
  func.func @transform_1(%arg0: i32, %arg1: i32) -> (i32, i32) {
    %c0_i32 = arith.constant 0 : i32
    %c0_i32_0 = arith.constant 0 : i32
    return %arg1, %c0_i32 : i32, i32
  }
  func.func @transform_2(%arg0: i32, %arg1: i32) -> (i32, i32) {
    %c0_i32 = arith.constant 0 : i32
    %c0_i32_0 = arith.constant 0 : i32
    %c0_i32_1 = arith.constant 0 : i32
    return %c0_i32, %c0_i32_0 : i32, i32
  }
  func.func @transform_3(%arg0: i32, %arg1: i32) -> (i32, i32) {
    %c0_i32 = arith.constant 0 : i32
    %c0_i32_0 = arith.constant 0 : i32
    %c0_i32_1 = arith.constant 0 : i32
    return %c0_i32, %c0_i32_0 : i32, i32
  }
  func.func @transform_4(%arg0: i32, %arg1: i32) -> (i32, i32) {
    %c0_i32 = arith.constant 0 : i32
    %c0_i32_0 = arith.constant 0 : i32
    %c0_i32_1 = arith.constant 0 : i32
    return %c0_i32, %c0_i32_0 : i32, i32
  }
  func.func @transform_5(%arg0: i32, %arg1: i32) -> (i32, i32) {
    %c0_i32 = arith.constant 0 : i32
    %c0_i32_0 = arith.constant 0 : i32
    %c0_i32_1 = arith.constant 0 : i32
    return %c0_i32, %c0_i32_0 : i32, i32
  }
  func.func @transform_6(%arg0: i32, %arg1: i32) -> (i32, i32) {
    %c0_i32 = arith.constant 0 : i32
    %c0_i32_0 = arith.constant 0 : i32
    %c0_i32_1 = arith.constant 0 : i32
    return %c0_i32, %c0_i32_0 : i32, i32
  }
  func.func @transform_7(%arg0: i32, %arg1: i32) -> (i32, i32) {
    %c0_i32 = arith.constant 0 : i32
    %c0_i32_0 = arith.constant 0 : i32
    return %arg0, %c0_i32 : i32, i32
  }
}

</mosaic_0001>

<llo_original>
// kernel: _lambda_.1
$region0: #{_lambda_.1}
  #allocation0 [shape = 'u32[]', space=smem, size = 0x4, offset = 0x4, fixed_abs, tag = 'smem constant byte address 0x4 - core index']
  #allocation1 [shape = 'u32[72,128]{1,0:T(1,128)}', space=vmem, size = 0x9000, scoped, tag = 'internal scratch']
  #allocation2 [shape = 'f32[8,512]{1,0:T(8,128)}', space=vmem, size = 0x4000, scoped, tag = 'scratch operand']
  #allocation3 [shape = 'f32[1,1]{1,0:T(1,128)S(6)}', space=smem, size = 0x200, scoped, tag = 'scoped memory for _lambda_.1']
  %s0 = inlined_call_operand.vmem [shape: bf16[8,1024], index: 0, kind: input, shape index: {}]
  %s1 = inlined_call_operand.hbm [shape: bf16[1024,512], index: 1, kind: input, shape index: {}]
  %s2 = inlined_call_operand.vmem [shape: f32[1,512], index: 2, kind: input, shape index: {}]
  %s3 = inlined_call_operand.hbm [shape: bf16[512,256], index: 3, kind: input, shape index: {}]
  %s4 = inlined_call_operand.vmem [shape: f32[1,256], index: 4, kind: input, shape index: {}]
  %s5 = inlined_call_operand.vmem [shape: f32[1,256], index: 5, kind: input, shape index: {}]
  %s6 = inlined_call_operand.<no memory space> [shape: f32[1,1], index: 6, kind: input, shape index: {}]
  %s7 = inlined_call_operand.vmem [shape: f32[8,128], index: 7, kind: output, shape index: {}]
  %s8 = sld [smem:[#allocation0]]
  $region54: #{_lambda_.1} parent=0
    _
  %s10 = ssub.s32 1, %s8
  %s11 = scalar_select 0, %s10, %s8
  %12 = sst [smem:[#allocation3]] %s6
  $region1: #{_lambda_.1} parent=0
    #allocation4 [shape = 'u8[1048576]{0}', space=vmem, size = 0x100000, scoped, tag = 'input window, operand 1, single buffered']
    #allocation5 [shape = 's32[1]{0}', space=sflag, size = 0x4, scoped, tag = 'scoped memory for _lambda_.1']
    #allocation6 [shape = 'u8[262144]{0}', space=vmem, size = 0x40000, scoped, tag = 'input window, operand 3, single buffered']
    #allocation7 [shape = 's32[1]{0}', space=sflag, size = 0x4, scoped, tag = 'scoped memory for _lambda_.1']
    %13 = vsyncpa [#allocation5], 0
    %14 = vsyncpa [#allocation7], 0
    // Predicated region
    $region2: #{_lambda_.1} parent=1 // pred_check
      _
    $region3: #{_lambda_.1} parent=1 // pred_check_branch
      %16 = sbr.rel (0) target = $region5
    $region4: #{_lambda_.1} parent=1 // pred_region
      _
    $region5: #{_lambda_.1} parent=1 // pred_fallthru
      _
    // Predicated region
    $region6: #{_lambda_.1} parent=1 // pred_check
      _
    $region7: #{_lambda_.1} parent=1 // pred_check_branch
      %18 = sbr.rel (0) target = $region9
    $region8: #{_lambda_.1} parent=1 // pred_region
      %20 = vsyncadd [#allocation5], 0
      %s21 = sshll.u32 %s1, 4
      %s22 = int_to_ptr.hbm [resolvable:$true] %s21
      %s23 = sshll.u32 [#allocation4], 4
      %s24 = int_to_ptr.vmem [resolvable:$true] %s23
      %29 = dma.hbm_to_vmem [thread:$0]  %s22, 32768, %s24, [#allocation5], 256, 256, 16
    $region9: #{_lambda_.1} parent=1 // pred_fallthru
      _
    // Predicated region
    $region10: #{_lambda_.1} parent=1 // pred_check
      _
    $region11: #{_lambda_.1} parent=1 // pred_check_branch
      %31 = sbr.rel (0) target = $region13
    $region12: #{_lambda_.1} parent=1 // pred_region
      _
    $region13: #{_lambda_.1} parent=1 // pred_fallthru
      _
    // Predicated region
    $region14: #{_lambda_.1} parent=1 // pred_check
      _
    $region15: #{_lambda_.1} parent=1 // pred_check_branch
      %33 = sbr.rel (0) target = $region17
    $region16: #{_lambda_.1} parent=1 // pred_region
      %35 = vsyncadd [#allocation7], 0
      %s36 = sshll.u32 %s3, 4
      %s37 = int_to_ptr.hbm [resolvable:$true] %s36
      %s38 = sshll.u32 [#allocation6], 4
      %s39 = int_to_ptr.vmem [resolvable:$true] %s38
      %44 = dma.hbm_to_vmem [thread:$0]  %s37, 8192, %s39, [#allocation7], 128, 128, 8
    $region17: #{_lambda_.1} parent=1 // pred_fallthru
      _
    // Predicated region
    $region18: #{_lambda_.1} parent=1 // pred_check
      _
    $region19: #{_lambda_.1} parent=1 // pred_check_branch
      %46 = sbr.rel (0) target = $region21
    $region20: #{_lambda_.1} parent=1 // pred_region
      _
    $region21: #{_lambda_.1} parent=1 // pred_fallthru
      _
    // Predicated region
    $region22: #{_lambda_.1} parent=1 // pred_check
      _
    $region23: #{_lambda_.1} parent=1 // pred_check_branch
      %48 = sbr.rel (0) target = $region25
    $region24: #{_lambda_.1} parent=1 // pred_region
      _
    $region25: #{_lambda_.1} parent=1 // pred_fallthru
      _
    // Predicated region
    $region26: #{_lambda_.1} parent=1 // pred_check
      _
    $region27: #{_lambda_.1} parent=1 // pred_check_branch
      %50 = sbr.rel (0) target = $region29
    $region28: #{_lambda_.1} parent=1 // pred_region
      _
    $region29: #{_lambda_.1} parent=1 // pred_fallthru
      _
    // Predicated region
    $region30: #{_lambda_.1} parent=1 // pred_check
      _
    $region31: #{_lambda_.1} parent=1 // pred_check_branch
      %52 = sbr.rel (0) target = $region33
    $region32: #{_lambda_.1} parent=1 // pred_region
      %54 = dma.done [#allocation5], 32768
    $region33: #{_lambda_.1} parent=1 // pred_fallthru
      _
    // Predicated region
    $region34: #{_lambda_.1} parent=1 // pred_check
      _
    $region35: #{_lambda_.1} parent=1 // pred_check_branch
      %56 = sbr.rel (0) target = $region37
    $region36: #{_lambda_.1} parent=1 // pred_region
      %58 = dma.done [#allocation7], 8192
    $region37: #{_lambda_.1} parent=1 // pred_fallthru
      _
    %p59 = scmp.eq.s32.totalorder 0, 0
    // Predicated region
    $region38: #{_lambda_.1} parent=1 // pred_check
      %p60 = pneg %p59
    $region39: #{_lambda_.1} parent=1 // pred_check_branch
      %62 = sbr.rel (%p60) target = $region41
    $region40: #{_lambda_.1} parent=1 // pred_region
      %63 = vst [vmem:[#allocation2] sm:$0xff] 0.0
      %64 = vst [vmem:[#allocation2 + $0x8] sm:$0xff] 0.0
      %65 = vst [vmem:[#allocation2 + $0x10] sm:$0xff] 0.0
      %66 = vst [vmem:[#allocation2 + $0x18] sm:$0xff] 0.0
    $region41: #{_lambda_.1} parent=1 // pred_fallthru
      _
    %v67 = vld [vmem:[#allocation2] sm:$0xff]
    %v68 = vld [vmem:[#allocation2 + $0x8] sm:$0xff]
    %v69 = vld [vmem:[#allocation2 + $0x10] sm:$0xff]
    %v70 = vld [vmem:[#allocation2 + $0x18] sm:$0xff]
    %v71 = vld [vmem:[%s0] sm:$0xff]
    %v72 = vld [vmem:[%s0 + $0x8] sm:$0xff]
    %v73 = vld [vmem:[%s0 + $0x10] sm:$0xff]
    %v74 = vld [vmem:[%s0 + $0x18] sm:$0xff]
    %v75 = vld [vmem:[#allocation4] sm:$0xff]
    %v76 = vld [vmem:[#allocation4 + $0x8] sm:$0xff]
    %v77 = vld [vmem:[#allocation4 + $0x10] sm:$0xff]
    %v78 = vld [vmem:[#allocation4 + $0x18] sm:$0xff]
    %v79 = vld [vmem:[#allocation4 + $0x20] sm:$0xff]
    %v80 = vld [vmem:[#allocation4 + $0x28] sm:$0xff]
    %v81 = vld [vmem:[#allocation4 + $0x30] sm:$0xff]
    %v82 = vld [vmem:[#allocation4 + $0x38] sm:$0xff]
    %v83 = vld [vmem:[#allocation4 + $0x40] sm:$0xff]
    %v84 = vld [vmem:[#allocation4 + $0x48] sm:$0xff]
    %v85 = vld [vmem:[#allocation4 + $0x50] sm:$0xff]
    %v86 = vld [vmem:[#allocation4 + $0x58] sm:$0xff]
    %v87 = vld [vmem:[#allocation4 + $0x60] sm:$0xff]
    %v88 = vld [vmem:[#allocation4 + $0x68] sm:$0xff]
    %v89 = vld [vmem:[#allocation4 + $0x70] sm:$0xff]
    %v90 = vld [vmem:[#allocation4 + $0x78] sm:$0xff]
    %v91 = vld [vmem:[#allocation4 + $0x80] sm:$0xff]
    %v92 = vld [vmem:[#allocation4 + $0x88] sm:$0xff]
    %v93 = vld [vmem:[#allocation4 + $0x90] sm:$0xff]
    %v94 = vld [vmem:[#allocation4 + $0x98] sm:$0xff]
    %v95 = vld [vmem:[#allocation4 + $0xa0] sm:$0xff]
    %v96 = vld [vmem:[#allocation4 + $0xa8] sm:$0xff]
    %v97 = vld [vmem:[#allocation4 + $0xb0] sm:$0xff]
    %v98 = vld [vmem:[#allocation4 + $0xb8] sm:$0xff]
    %v99 = vld [vmem:[#allocation4 + $0xc0] sm:$0xff]
    %v100 = vld [vmem:[#allocation4 + $0xc8] sm:$0xff]
    %v101 = vld [vmem:[#allocation4 + $0xd0] sm:$0xff]
    %v102 = vld [vmem:[#allocation4 + $0xd8] sm:$0xff]
    %v103 = vld [vmem:[#allocation4 + $0xe0] sm:$0xff]
    %v104 = vld [vmem:[#allocation4 + $0xe8] sm:$0xff]
    %v105 = vld [vmem:[#allocation4 + $0xf0] sm:$0xff]
    %v106 = vld [vmem:[#allocation4 + $0xf8] sm:$0xff]
    %v107 = vld [vmem:[#allocation4 + $0x100] sm:$0xff]
    %v108 = vld [vmem:[#allocation4 + $0x108] sm:$0xff]
    %v109 = vld [vmem:[#allocation4 + $0x110] sm:$0xff]
    %v110 = vld [vmem:[#allocation4 + $0x118] sm:$0xff]
    %v111 = vld [vmem:[#allocation4 + $0x120] sm:$0xff]
    %v112 = vld [vmem:[#allocation4 + $0x128] sm:$0xff]
    %v113 = vld [vmem:[#allocation4 + $0x130] sm:$0xff]
    %v114 = vld [vmem:[#allocation4 + $0x138] sm:$0xff]
    %v115 = vld [vmem:[#allocation4 + $0x140] sm:$0xff]
    %v116 = vld [vmem:[#allocation4 + $0x148] sm:$0xff]
    %v117 = vld [vmem:[#allocation4 + $0x150] sm:$0xff]
    %v118 = vld [vmem:[#allocation4 + $0x158] sm:$0xff]
    %v119 = vld [vmem:[#allocation4 + $0x160] sm:$0xff]
    %v120 = vld [vmem:[#allocation4 + $0x168] sm:$0xff]
    %v121 = vld [vmem:[#allocation4 + $0x170] sm:$0xff]
    %v122 = vld [vmem:[#allocation4 + $0x178] sm:$0xff]
    %v123 = vld [vmem:[#allocation4 + $0x180] sm:$0xff]
    %v124 = vld [vmem:[#allocation4 + $0x188] sm:$0xff]
    %v125 = vld [vmem:[#allocation4 + $0x190] sm:$0xff]
    %v126 = vld [vmem:[#allocation4 + $0x198] sm:$0xff]
    %v127 = vld [vmem:[#allocation4 + $0x1a0] sm:$0xff]
    %v128 = vld [vmem:[#allocation4 + $0x1a8] sm:$0xff]
    %v129 = vld [vmem:[#allocation4 + $0x1b0] sm:$0xff]
    %v130 = vld [vmem:[#allocation4 + $0x1b8] sm:$0xff]
    %v131 = vld [vmem:[#allocation4 + $0x1c0] sm:$0xff]
    %v132 = vld [vmem:[#allocation4 + $0x1c8] sm:$0xff]
    %v133 = vld [vmem:[#allocation4 + $0x1d0] sm:$0xff]
    %v134 = vld [vmem:[#allocation4 + $0x1d8] sm:$0xff]
    %v135 = vld [vmem:[#allocation4 + $0x1e0] sm:$0xff]
    %v136 = vld [vmem:[#allocation4 + $0x1e8] sm:$0xff]
    %v137 = vld [vmem:[#allocation4 + $0x1f0] sm:$0xff]
    %v138 = vld [vmem:[#allocation4 + $0x1f8] sm:$0xff]
    %v139 = vld [vmem:[#allocation4 + $0x200] sm:$0xff]
    %v140 = vld [vmem:[#allocation4 + $0x208] sm:$0xff]
    %v141 = vld [vmem:[#allocation4 + $0x210] sm:$0xff]
    %v142 = vld [vmem:[#allocation4 + $0x218] sm:$0xff]
    %v143 = vld [vmem:[#allocation4 + $0x220] sm:$0xff]
    %v144 = vld [vmem:[#allocation4 + $0x228] sm:$0xff]
    %v145 = vld [vmem:[#allocation4 + $0x230] sm:$0xff]
    %v146 = vld [vmem:[#allocation4 + $0x238] sm:$0xff]
    %v147 = vld [vmem:[#allocation4 + $0x240] sm:$0xff]
    %v148 = vld [vmem:[#allocation4 + $0x248] sm:$0xff]
    %v149 = vld [vmem:[#allocation4 + $0x250] sm:$0xff]
    %v150 = vld [vmem:[#allocation4 + $0x258] sm:$0xff]
    %v151 = vld [vmem:[#allocation4 + $0x260] sm:$0xff]
    %v152 = vld [vmem:[#allocation4 + $0x268] sm:$0xff]
    %v153 = vld [vmem:[#allocation4 + $0x270] sm:$0xff]
    %v154 = vld [vmem:[#allocation4 + $0x278] sm:$0xff]
    %v155 = vld [vmem:[#allocation4 + $0x280] sm:$0xff]
    %v156 = vld [vmem:[#allocation4 + $0x288] sm:$0xff]
    %v157 = vld [vmem:[#allocation4 + $0x290] sm:$0xff]
    %v158 = vld [vmem:[#allocation4 + $0x298] sm:$0xff]
    %v159 = vld [vmem:[#allocation4 + $0x2a0] sm:$0xff]
    %v160 = vld [vmem:[#allocation4 + $0x2a8] sm:$0xff]
    %v161 = vld [vmem:[#allocation4 + $0x2b0] sm:$0xff]
    %v162 = vld [vmem:[#allocation4 + $0x2b8] sm:$0xff]
    %v163 = vld [vmem:[#allocation4 + $0x2c0] sm:$0xff]
    %v164 = vld [vmem:[#allocation4 + $0x2c8] sm:$0xff]
    %v165 = vld [vmem:[#allocation4 + $0x2d0] sm:$0xff]
    %v166 = vld [vmem:[#allocation4 + $0x2d8] sm:$0xff]
    %v167 = vld [vmem:[#allocation4 + $0x2e0] sm:$0xff]
    %v168 = vld [vmem:[#allocation4 + $0x2e8] sm:$0xff]
    %v169 = vld [vmem:[#allocation4 + $0x2f0] sm:$0xff]
    %v170 = vld [vmem:[#allocation4 + $0x2f8] sm:$0xff]
    %v171 = vld [vmem:[#allocation4 + $0x300] sm:$0xff]
    %v172 = vld [vmem:[#allocation4 + $0x308] sm:$0xff]
    %v173 = vld [vmem:[#allocation4 + $0x310] sm:$0xff]
    %v174 = vld [vmem:[#allocation4 + $0x318] sm:$0xff]
    %v175 = vld [vmem:[#allocation4 + $0x320] sm:$0xff]
    %v176 = vld [vmem:[#allocation4 + $0x328] sm:$0xff]
    %v177 = vld [vmem:[#allocation4 + $0x330] sm:$0xff]
    %v178 = vld [vmem:[#allocation4 + $0x338] sm:$0xff]
    %v179 = vld [vmem:[#allocation4 + $0x340] sm:$0xff]
    %v180 = vld [vmem:[#allocation4 + $0x348] sm:$0xff]
    %v181 = vld [vmem:[#allocation4 + $0x350] sm:$0xff]
    %v182 = vld [vmem:[#allocation4 + $0x358] sm:$0xff]
    %v183 = vld [vmem:[#allocation4 + $0x360] sm:$0xff]
    %v184 = vld [vmem:[#allocation4 + $0x368] sm:$0xff]
    %v185 = vld [vmem:[#allocation4 + $0x370] sm:$0xff]
    %v186 = vld [vmem:[#allocation4 + $0x378] sm:$0xff]
    %v187 = vld [vmem:[#allocation4 + $0x380] sm:$0xff]
    %v188 = vld [vmem:[#allocation4 + $0x388] sm:$0xff]
    %v189 = vld [vmem:[#allocation4 + $0x390] sm:$0xff]
    %v190 = vld [vmem:[#allocation4 + $0x398] sm:$0xff]
    %v191 = vld [vmem:[#allocation4 + $0x3a0] sm:$0xff]
    %v192 = vld [vmem:[#allocation4 + $0x3a8] sm:$0xff]
    %v193 = vld [vmem:[#allocation4 + $0x3b0] sm:$0xff]
    %v194 = vld [vmem:[#allocation4 + $0x3b8] sm:$0xff]
    %v195 = vld [vmem:[#allocation4 + $0x3c0] sm:$0xff]
    %v196 = vld [vmem:[#allocation4 + $0x3c8] sm:$0xff]
    %v197 = vld [vmem:[#allocation4 + $0x3d0] sm:$0xff]
    %v198 = vld [vmem:[#allocation4 + $0x3d8] sm:$0xff]
    %v199 = vld [vmem:[#allocation4 + $0x3e0] sm:$0xff]
    %v200 = vld [vmem:[#allocation4 + $0x3e8] sm:$0xff]
    %v201 = vld [vmem:[#allocation4 + $0x3f0] sm:$0xff]
    %v202 = vld [vmem:[#allocation4 + $0x3f8] sm:$0xff]
    %v203 = vld [vmem:[#allocation4 + $0x400] sm:$0xff]
    %v204 = vld [vmem:[#allocation4 + $0x408] sm:$0xff]
    %v205 = vld [vmem:[#allocation4 + $0x410] sm:$0xff]
    %v206 = vld [vmem:[#allocation4 + $0x418] sm:$0xff]
    %v207 = vld [vmem:[#allocation4 + $0x420] sm:$0xff]
    %v208 = vld [vmem:[#allocation4 + $0x428] sm:$0xff]
    %v209 = vld [vmem:[#allocation4 + $0x430] sm:$0xff]
    %v210 = vld [vmem:[#allocation4 + $0x438] sm:$0xff]
    %v211 = vld [vmem:[#allocation4 + $0x440] sm:$0xff]
    %v212 = vld [vmem:[#allocation4 + $0x448] sm:$0xff]
    %v213 = vld [vmem:[#allocation4 + $0x450] sm:$0xff]
    %v214 = vld [vmem:[#allocation4 + $0x458] sm:$0xff]
    %v215 = vld [vmem:[#allocation4 + $0x460] sm:$0xff]
    %v216 = vld [vmem:[#allocation4 + $0x468] sm:$0xff]
    %v217 = vld [vmem:[#allocation4 + $0x470] sm:$0xff]
    %v218 = vld [vmem:[#allocation4 + $0x478] sm:$0xff]
    %v219 = vld [vmem:[#allocation4 + $0x480] sm:$0xff]
    %v220 = vld [vmem:[#allocation4 + $0x488] sm:$0xff]
    %v221 = vld [vmem:[#allocation4 + $0x490] sm:$0xff]
    %v222 = vld [vmem:[#allocation4 + $0x498] sm:$0xff]
    %v223 = vld [vmem:[#allocation4 + $0x4a0] sm:$0xff]
    %v224 = vld [vmem:[#allocation4 + $0x4a8] sm:$0xff]
    %v225 = vld [vmem:[#allocation4 + $0x4b0] sm:$0xff]
    %v226 = vld [vmem:[#allocation4 + $0x4b8] sm:$0xff]
    %v227 = vld [vmem:[#allocation4 + $0x4c0] sm:$0xff]
    %v228 = vld [vmem:[#allocation4 + $0x4c8] sm:$0xff]
    %v229 = vld [vmem:[#allocation4 + $0x4d0] sm:$0xff]
    %v230 = vld [vmem:[#allocation4 + $0x4d8] sm:$0xff]
    %v231 = vld [vmem:[#allocation4 + $0x4e0] sm:$0xff]
    %v232 = vld [vmem:[#allocation4 + $0x4e8] sm:$0xff]
    %v233 = vld [vmem:[#allocation4 + $0x4f0] sm:$0xff]
    %v234 = vld [vmem:[#allocation4 + $0x4f8] sm:$0xff]
    %v235 = vld [vmem:[#allocation4 + $0x500] sm:$0xff]
    %v236 = vld [vmem:[#allocation4 + $0x508] sm:$0xff]
    %v237 = vld [vmem:[#allocation4 + $0x510] sm:$0xff]
    %v238 = vld [vmem:[#allocation4 + $0x518] sm:$0xff]
    %v239 = vld [vmem:[#allocation4 + $0x520] sm:$0xff]
    %v240 = vld [vmem:[#allocation4 + $0x528] sm:$0xff]
    %v241 = vld [vmem:[#allocation4 + $0x530] sm:$0xff]
    %v242 = vld [vmem:[#allocation4 + $0x538] sm:$0xff]
    %v243 = vld [vmem:[#allocation4 + $0x540] sm:$0xff]
    %v244 = vld [vmem:[#allocation4 + $0x548] sm:$0xff]
    %v245 = vld [vmem:[#allocation4 + $0x550] sm:$0xff]
    %v246 = vld [vmem:[#allocation4 + $0x558] sm:$0xff]
    %v247 = vld [vmem:[#allocation4 + $0x560] sm:$0xff]
    %v248 = vld [vmem:[#allocation4 + $0x568] sm:$0xff]
    %v249 = vld [vmem:[#allocation4 + $0x570] sm:$0xff]
    %v250 = vld [vmem:[#allocation4 + $0x578] sm:$0xff]
    %v251 = vld [vmem:[#allocation4 + $0x580] sm:$0xff]
    %v252 = vld [vmem:[#allocation4 + $0x588] sm:$0xff]
    %v253 = vld [vmem:[#allocation4 + $0x590] sm:$0xff]
    %v254 = vld [vmem:[#allocation4 + $0x598] sm:$0xff]
    %v255 = vld [vmem:[#allocation4 + $0x5a0] sm:$0xff]
    %v256 = vld [vmem:[#allocation4 + $0x5a8] sm:$0xff]
    %v257 = vld [vmem:[#allocation4 + $0x5b0] sm:$0xff]
    %v258 = vld [vmem:[#allocation4 + $0x5b8] sm:$0xff]
    %v259 = vld [vmem:[#allocation4 + $0x5c0] sm:$0xff]
    %v260 = vld [vmem:[#allocation4 + $0x5c8] sm:$0xff]
    %v261 = vld [vmem:[#allocation4 + $0x5d0] sm:$0xff]
    %v262 = vld [vmem:[#allocation4 + $0x5d8] sm:$0xff]
    %v263 = vld [vmem:[#allocation4 + $0x5e0] sm:$0xff]
    %v264 = vld [vmem:[#allocation4 + $0x5e8] sm:$0xff]
    %v265 = vld [vmem:[#allocation4 + $0x5f0] sm:$0xff]
    %v266 = vld [vmem:[#allocation4 + $0x5f8] sm:$0xff]
    %v267 = vld [vmem:[#allocation4 + $0x600] sm:$0xff]
    %v268 = vld [vmem:[#allocation4 + $0x608] sm:$0xff]
    %v269 = vld [vmem:[#allocation4 + $0x610] sm:$0xff]
    %v270 = vld [vmem:[#allocation4 + $0x618] sm:$0xff]
    %v271 = vld [vmem:[#allocation4 + $0x620] sm:$0xff]
    %v272 = vld [vmem:[#allocation4 + $0x628] sm:$0xff]
    %v273 = vld [vmem:[#allocation4 + $0x630] sm:$0xff]
    %v274 = vld [vmem:[#allocation4 + $0x638] sm:$0xff]
    %v275 = vld [vmem:[#allocation4 + $0x640] sm:$0xff]
    %v276 = vld [vmem:[#allocation4 + $0x648] sm:$0xff]
    %v277 = vld [vmem:[#allocation4 + $0x650] sm:$0xff]
    %v278 = vld [vmem:[#allocation4 + $0x658] sm:$0xff]
    %v279 = vld [vmem:[#allocation4 + $0x660] sm:$0xff]
    %v280 = vld [vmem:[#allocation4 + $0x668] sm:$0xff]
    %v281 = vld [vmem:[#allocation4 + $0x670] sm:$0xff]
    %v282 = vld [vmem:[#allocation4 + $0x678] sm:$0xff]
    %v283 = vld [vmem:[#allocation4 + $0x680] sm:$0xff]
    %v284 = vld [vmem:[#allocation4 + $0x688] sm:$0xff]
    %v285 = vld [vmem:[#allocation4 + $0x690] sm:$0xff]
    %v286 = vld [vmem:[#allocation4 + $0x698] sm:$0xff]
    %v287 = vld [vmem:[#allocation4 + $0x6a0] sm:$0xff]
    %v288 = vld [vmem:[#allocation4 + $0x6a8] sm:$0xff]
    %v289 = vld [vmem:[#allocation4 + $0x6b0] sm:$0xff]
    %v290 = vld [vmem:[#allocation4 + $0x6b8] sm:$0xff]
    %v291 = vld [vmem:[#allocation4 + $0x6c0] sm:$0xff]
    %v292 = vld [vmem:[#allocation4 + $0x6c8] sm:$0xff]
    %v293 = vld [vmem:[#allocation4 + $0x6d0] sm:$0xff]
    %v294 = vld [vmem:[#allocation4 + $0x6d8] sm:$0xff]
    %v295 = vld [vmem:[#allocation4 + $0x6e0] sm:$0xff]
    %v296 = vld [vmem:[#allocation4 + $0x6e8] sm:$0xff]
    %v297 = vld [vmem:[#allocation4 + $0x6f0] sm:$0xff]
    %v298 = vld [vmem:[#allocation4 + $0x6f8] sm:$0xff]
    %v299 = vld [vmem:[#allocation4 + $0x700] sm:$0xff]
    %v300 = vld [vmem:[#allocation4 + $0x708] sm:$0xff]
    %v301 = vld [vmem:[#allocation4 + $0x710] sm:$0xff]
    %v302 = vld [vmem:[#allocation4 + $0x718] sm:$0xff]
    %v303 = vld [vmem:[#allocation4 + $0x720] sm:$0xff]
    %v304 = vld [vmem:[#allocation4 + $0x728] sm:$0xff]
    %v305 = vld [vmem:[#allocation4 + $0x730] sm:$0xff]
    %v306 = vld [vmem:[#allocation4 + $0x738] sm:$0xff]
    %v307 = vld [vmem:[#allocation4 + $0x740] sm:$0xff]
    %v308 = vld [vmem:[#allocation4 + $0x748] sm:$0xff]
    %v309 = vld [vmem:[#allocation4 + $0x750] sm:$0xff]
    %v310 = vld [vmem:[#allocation4 + $0x758] sm:$0xff]
    %v311 = vld [vmem:[#allocation4 + $0x760] sm:$0xff]
    %v312 = vld [vmem:[#allocation4 + $0x768] sm:$0xff]
    %v313 = vld [vmem:[#allocation4 + $0x770] sm:$0xff]
    %v314 = vld [vmem:[#allocation4 + $0x778] sm:$0xff]
    %v315 = vld [vmem:[#allocation4 + $0x780] sm:$0xff]
    %v316 = vld [vmem:[#allocation4 + $0x788] sm:$0xff]
    %v317 = vld [vmem:[#allocation4 + $0x790] sm:$0xff]
    %v318 = vld [vmem:[#allocation4 + $0x798] sm:$0xff]
    %v319 = vld [vmem:[#allocation4 + $0x7a0] sm:$0xff]
    %v320 = vld [vmem:[#allocation4 + $0x7a8] sm:$0xff]
    %v321 = vld [vmem:[#allocation4 + $0x7b0] sm:$0xff]
    %v322 = vld [vmem:[#allocation4 + $0x7b8] sm:$0xff]
    %v323 = vld [vmem:[#allocation4 + $0x7c0] sm:$0xff]
    %v324 = vld [vmem:[#allocation4 + $0x7c8] sm:$0xff]
    %v325 = vld [vmem:[#allocation4 + $0x7d0] sm:$0xff]
    %v326 = vld [vmem:[#allocation4 + $0x7d8] sm:$0xff]
    %v327 = vld [vmem:[#allocation4 + $0x7e0] sm:$0xff]
    %v328 = vld [vmem:[#allocation4 + $0x7e8] sm:$0xff]
    %v329 = vld [vmem:[#allocation4 + $0x7f0] sm:$0xff]
    %v330 = vld [vmem:[#allocation4 + $0x7f8] sm:$0xff]
    %v335 = vunpack.c.l.b16 %v71
    %v336 = vunpack.c.h.b16 %v71
    %v337 = vunpack.c.l.b16 %v72
    %v338 = vunpack.c.h.b16 %v72
    %v339 = vunpack.c.l.b16 %v73
    %v340 = vunpack.c.h.b16 %v73
    %v341 = vunpack.c.l.b16 %v74
    %v342 = vunpack.c.h.b16 %v74
    %v343 = vpack.c.b16 %v335, %v335
    %v344 = vpack.c.b16 %v336, %v336
    %v345 = vpack.c.b16 %v337, %v337
    %v346 = vpack.c.b16 %v338, %v338
    %v347 = vpack.c.b16 %v339, %v339
    %v348 = vpack.c.b16 %v340, %v340
    %v349 = vpack.c.b16 %v341, %v341
    %v350 = vpack.c.b16 %v342, %v342
    %v615 = vunpack.c.l.b16 %v75
    %v616 = vunpack.c.h.b16 %v75
    %v617 = vunpack.c.l.b16 %v76
    %v618 = vunpack.c.h.b16 %v76
    %v619 = vunpack.c.l.b16 %v77
    %v620 = vunpack.c.h.b16 %v77
    %v621 = vunpack.c.l.b16 %v78
    %v622 = vunpack.c.h.b16 %v78
    %v623 = vunpack.c.l.b16 %v79
    %v624 = vunpack.c.h.b16 %v79
    %v625 = vunpack.c.l.b16 %v80
    %v626 = vunpack.c.h.b16 %v80
    %v627 = vunpack.c.l.b16 %v81
    %v628 = vunpack.c.h.b16 %v81
    %v629 = vunpack.c.l.b16 %v82
    %v630 = vunpack.c.h.b16 %v82
    %v631 = vunpack.c.l.b16 %v83
    %v632 = vunpack.c.h.b16 %v83
    %v633 = vunpack.c.l.b16 %v84
    %v634 = vunpack.c.h.b16 %v84
    %v635 = vunpack.c.l.b16 %v85
    %v636 = vunpack.c.h.b16 %v85
    %v637 = vunpack.c.l.b16 %v86
    %v638 = vunpack.c.h.b16 %v86
    %v639 = vunpack.c.l.b16 %v87
    %v640 = vunpack.c.h.b16 %v87
    %v641 = vunpack.c.l.b16 %v88
    %v642 = vunpack.c.h.b16 %v88
    %v643 = vunpack.c.l.b16 %v89
    %v644 = vunpack.c.h.b16 %v89
    %v645 = vunpack.c.l.b16 %v90
    %v646 = vunpack.c.h.b16 %v90
    %v647 = vunpack.c.l.b16 %v91
    %v648 = vunpack.c.h.b16 %v91
    %v649 = vunpack.c.l.b16 %v92
    %v650 = vunpack.c.h.b16 %v92
    %v651 = vunpack.c.l.b16 %v93
    %v652 = vunpack.c.h.b16 %v93
    %v653 = vunpack.c.l.b16 %v94
    %v654 = vunpack.c.h.b16 %v94
    %v655 = vunpack.c.l.b16 %v95
    %v656 = vunpack.c.h.b16 %v95
    %v657 = vunpack.c.l.b16 %v96
    %v658 = vunpack.c.h.b16 %v96
    %v659 = vunpack.c.l.b16 %v97
    %v660 = vunpack.c.h.b16 %v97
    %v661 = vunpack.c.l.b16 %v98
    %v662 = vunpack.c.h.b16 %v98
    %v663 = vunpack.c.l.b16 %v99
    %v664 = vunpack.c.h.b16 %v99
    %v665 = vunpack.c.l.b16 %v100
    %v666 = vunpack.c.h.b16 %v100
    %v667 = vunpack.c.l.b16 %v101
    %v668 = vunpack.c.h.b16 %v101
    %v669 = vunpack.c.l.b16 %v102
    %v670 = vunpack.c.h.b16 %v102
    %v671 = vunpack.c.l.b16 %v103
    %v672 = vunpack.c.h.b16 %v103
    %v673 = vunpack.c.l.b16 %v104
    %v674 = vunpack.c.h.b16 %v104
    %v675 = vunpack.c.l.b16 %v105
    %v676 = vunpack.c.h.b16 %v105
    %v677 = vunpack.c.l.b16 %v106
    %v678 = vunpack.c.h.b16 %v106
    %v679 = vunpack.c.l.b16 %v107
    %v680 = vunpack.c.h.b16 %v107
    %v681 = vunpack.c.l.b16 %v108
    %v682 = vunpack.c.h.b16 %v108
    %v683 = vunpack.c.l.b16 %v109
    %v684 = vunpack.c.h.b16 %v109
    %v685 = vunpack.c.l.b16 %v110
    %v686 = vunpack.c.h.b16 %v110
    %v687 = vunpack.c.l.b16 %v111
    %v688 = vunpack.c.h.b16 %v111
    %v689 = vunpack.c.l.b16 %v112
    %v690 = vunpack.c.h.b16 %v112
    %v691 = vunpack.c.l.b16 %v113
    %v692 = vunpack.c.h.b16 %v113
    %v693 = vunpack.c.l.b16 %v114
    %v694 = vunpack.c.h.b16 %v114
    %v695 = vunpack.c.l.b16 %v115
    %v696 = vunpack.c.h.b16 %v115
    %v697 = vunpack.c.l.b16 %v116
    %v698 = vunpack.c.h.b16 %v116
    %v699 = vunpack.c.l.b16 %v117
    %v700 = vunpack.c.h.b16 %v117
    %v701 = vunpack.c.l.b16 %v118
    %v702 = vunpack.c.h.b16 %v118
    %v703 = vunpack.c.l.b16 %v119
    %v704 = vunpack.c.h.b16 %v119
    %v705 = vunpack.c.l.b16 %v120
    %v706 = vunpack.c.h.b16 %v120
    %v707 = vunpack.c.l.b16 %v121
    %v708 = vunpack.c.h.b16 %v121
    %v709 = vunpack.c.l.b16 %v122
    %v710 = vunpack.c.h.b16 %v122
    %v711 = vunpack.c.l.b16 %v123
    %v712 = vunpack.c.h.b16 %v123
    %v713 = vunpack.c.l.b16 %v124
    %v714 = vunpack.c.h.b16 %v124
    %v715 = vunpack.c.l.b16 %v125
    %v716 = vunpack.c.h.b16 %v125
    %v717 = vunpack.c.l.b16 %v126
    %v718 = vunpack.c.h.b16 %v126
    %v719 = vunpack.c.l.b16 %v127
    %v720 = vunpack.c.h.b16 %v127
    %v721 = vunpack.c.l.b16 %v128
    %v722 = vunpack.c.h.b16 %v128
    %v723 = vunpack.c.l.b16 %v129
    %v724 = vunpack.c.h.b16 %v129
    %v725 = vunpack.c.l.b16 %v130
    %v726 = vunpack.c.h.b16 %v130
    %v727 = vunpack.c.l.b16 %v131
    %v728 = vunpack.c.h.b16 %v131
    %v729 = vunpack.c.l.b16 %v132
    %v730 = vunpack.c.h.b16 %v132
    %v731 = vunpack.c.l.b16 %v133
    %v732 = vunpack.c.h.b16 %v133
    %v733 = vunpack.c.l.b16 %v134
    %v734 = vunpack.c.h.b16 %v134
    %v735 = vunpack.c.l.b16 %v135
    %v736 = vunpack.c.h.b16 %v135
    %v737 = vunpack.c.l.b16 %v136
    %v738 = vunpack.c.h.b16 %v136
    %v739 = vunpack.c.l.b16 %v137
    %v740 = vunpack.c.h.b16 %v137
    %v741 = vunpack.c.l.b16 %v138
    %v742 = vunpack.c.h.b16 %v138
    %v743 = vunpack.c.l.b16 %v139
    %v744 = vunpack.c.h.b16 %v139
    %v745 = vunpack.c.l.b16 %v140
    %v746 = vunpack.c.h.b16 %v140
    %v747 = vunpack.c.l.b16 %v141
    %v748 = vunpack.c.h.b16 %v141
    %v749 = vunpack.c.l.b16 %v142
    %v750 = vunpack.c.h.b16 %v142
    %v751 = vunpack.c.l.b16 %v143
    %v752 = vunpack.c.h.b16 %v143
    %v753 = vunpack.c.l.b16 %v144
    %v754 = vunpack.c.h.b16 %v144
    %v755 = vunpack.c.l.b16 %v145
    %v756 = vunpack.c.h.b16 %v145
    %v757 = vunpack.c.l.b16 %v146
    %v758 = vunpack.c.h.b16 %v146
    %v759 = vunpack.c.l.b16 %v147
    %v760 = vunpack.c.h.b16 %v147
    %v761 = vunpack.c.l.b16 %v148
    %v762 = vunpack.c.h.b16 %v148
    %v763 = vunpack.c.l.b16 %v149
    %v764 = vunpack.c.h.b16 %v149
    %v765 = vunpack.c.l.b16 %v150
    %v766 = vunpack.c.h.b16 %v150
    %v767 = vunpack.c.l.b16 %v151
    %v768 = vunpack.c.h.b16 %v151
    %v769 = vunpack.c.l.b16 %v152
    %v770 = vunpack.c.h.b16 %v152
    %v771 = vunpack.c.l.b16 %v153
    %v772 = vunpack.c.h.b16 %v153
    %v773 = vunpack.c.l.b16 %v154
    %v774 = vunpack.c.h.b16 %v154
    %v775 = vunpack.c.l.b16 %v155
    %v776 = vunpack.c.h.b16 %v155
    %v777 = vunpack.c.l.b16 %v156
    %v778 = vunpack.c.h.b16 %v156
    %v779 = vunpack.c.l.b16 %v157
    %v780 = vunpack.c.h.b16 %v157
    %v781 = vunpack.c.l.b16 %v158
    %v782 = vunpack.c.h.b16 %v158
    %v783 = vunpack.c.l.b16 %v159
    %v784 = vunpack.c.h.b16 %v159
    %v785 = vunpack.c.l.b16 %v160
    %v786 = vunpack.c.h.b16 %v160
    %v787 = vunpack.c.l.b16 %v161
    %v788 = vunpack.c.h.b16 %v161
    %v789 = vunpack.c.l.b16 %v162
    %v790 = vunpack.c.h.b16 %v162
    %v791 = vunpack.c.l.b16 %v163
    %v792 = vunpack.c.h.b16 %v163
    %v793 = vunpack.c.l.b16 %v164
    %v794 = vunpack.c.h.b16 %v164
    %v795 = vunpack.c.l.b16 %v165
    %v796 = vunpack.c.h.b16 %v165
    %v797 = vunpack.c.l.b16 %v166
    %v798 = vunpack.c.h.b16 %v166
    %v799 = vunpack.c.l.b16 %v167
    %v800 = vunpack.c.h.b16 %v167
    %v801 = vunpack.c.l.b16 %v168
    %v802 = vunpack.c.h.b16 %v168
    %v803 = vunpack.c.l.b16 %v169
    %v804 = vunpack.c.h.b16 %v169
    %v805 = vunpack.c.l.b16 %v170
    %v806 = vunpack.c.h.b16 %v170
    %v807 = vunpack.c.l.b16 %v171
    %v808 = vunpack.c.h.b16 %v171
    %v809 = vunpack.c.l.b16 %v172
    %v810 = vunpack.c.h.b16 %v172
    %v811 = vunpack.c.l.b16 %v173
    %v812 = vunpack.c.h.b16 %v173
    %v813 = vunpack.c.l.b16 %v174
    %v814 = vunpack.c.h.b16 %v174
    %v815 = vunpack.c.l.b16 %v175
    %v816 = vunpack.c.h.b16 %v175
    %v817 = vunpack.c.l.b16 %v176
    %v818 = vunpack.c.h.b16 %v176
    %v819 = vunpack.c.l.b16 %v177
    %v820 = vunpack.c.h.b16 %v177
    %v821 = vunpack.c.l.b16 %v178
    %v822 = vunpack.c.h.b16 %v178
    %v823 = vunpack.c.l.b16 %v179
    %v824 = vunpack.c.h.b16 %v179
    %v825 = vunpack.c.l.b16 %v180
    %v826 = vunpack.c.h.b16 %v180
    %v827 = vunpack.c.l.b16 %v181
    %v828 = vunpack.c.h.b16 %v181
    %v829 = vunpack.c.l.b16 %v182
    %v830 = vunpack.c.h.b16 %v182
    %v831 = vunpack.c.l.b16 %v183
    %v832 = vunpack.c.h.b16 %v183
    %v833 = vunpack.c.l.b16 %v184
    %v834 = vunpack.c.h.b16 %v184
    %v835 = vunpack.c.l.b16 %v185
    %v836 = vunpack.c.h.b16 %v185
    %v837 = vunpack.c.l.b16 %v186
    %v838 = vunpack.c.h.b16 %v186
    %v839 = vunpack.c.l.b16 %v187
    %v840 = vunpack.c.h.b16 %v187
    %v841 = vunpack.c.l.b16 %v188
    %v842 = vunpack.c.h.b16 %v188
    %v843 = vunpack.c.l.b16 %v189
    %v844 = vunpack.c.h.b16 %v189
    %v845 = vunpack.c.l.b16 %v190
    %v846 = vunpack.c.h.b16 %v190
    %v847 = vunpack.c.l.b16 %v191
    %v848 = vunpack.c.h.b16 %v191
    %v849 = vunpack.c.l.b16 %v192
    %v850 = vunpack.c.h.b16 %v192
    %v851 = vunpack.c.l.b16 %v193
    %v852 = vunpack.c.h.b16 %v193
    %v853 = vunpack.c.l.b16 %v194
    %v854 = vunpack.c.h.b16 %v194
    %v855 = vunpack.c.l.b16 %v195
    %v856 = vunpack.c.h.b16 %v195
    %v857 = vunpack.c.l.b16 %v196
    %v858 = vunpack.c.h.b16 %v196
    %v859 = vunpack.c.l.b16 %v197
    %v860 = vunpack.c.h.b16 %v197
    %v861 = vunpack.c.l.b16 %v198
    %v862 = vunpack.c.h.b16 %v198
    %v863 = vunpack.c.l.b16 %v199
    %v864 = vunpack.c.h.b16 %v199
    %v865 = vunpack.c.l.b16 %v200
    %v866 = vunpack.c.h.b16 %v200
    %v867 = vunpack.c.l.b16 %v201
    %v868 = vunpack.c.h.b16 %v201
    %v869 = vunpack.c.l.b16 %v202
    %v870 = vunpack.c.h.b16 %v202
    %v871 = vunpack.c.l.b16 %v203
    %v872 = vunpack.c.h.b16 %v203
    %v873 = vunpack.c.l.b16 %v204
    %v874 = vunpack.c.h.b16 %v204
    %v875 = vunpack.c.l.b16 %v205
    %v876 = vunpack.c.h.b16 %v205
    %v877 = vunpack.c.l.b16 %v206
    %v878 = vunpack.c.h.b16 %v206
    %v879 = vunpack.c.l.b16 %v207
    %v880 = vunpack.c.h.b16 %v207
    %v881 = vunpack.c.l.b16 %v208
    %v882 = vunpack.c.h.b16 %v208
    %v883 = vunpack.c.l.b16 %v209
    %v884 = vunpack.c.h.b16 %v209
    %v885 = vunpack.c.l.b16 %v210
    %v886 = vunpack.c.h.b16 %v210
    %v887 = vunpack.c.l.b16 %v211
    %v888 = vunpack.c.h.b16 %v211
    %v889 = vunpack.c.l.b16 %v212
    %v890 = vunpack.c.h.b16 %v212
    %v891 = vunpack.c.l.b16 %v213
    %v892 = vunpack.c.h.b16 %v213
    %v893 = vunpack.c.l.b16 %v214
    %v894 = vunpack.c.h.b16 %v214
    %v895 = vunpack.c.l.b16 %v215
    %v896 = vunpack.c.h.b16 %v215
    %v897 = vunpack.c.l.b16 %v216
    %v898 = vunpack.c.h.b16 %v216
    %v899 = vunpack.c.l.b16 %v217
    %v900 = vunpack.c.h.b16 %v217
    %v901 = vunpack.c.l.b16 %v218
    %v902 = vunpack.c.h.b16 %v218
    %v903 = vunpack.c.l.b16 %v219
    %v904 = vunpack.c.h.b16 %v219
    %v905 = vunpack.c.l.b16 %v220
    %v906 = vunpack.c.h.b16 %v220
    %v907 = vunpack.c.l.b16 %v221
    %v908 = vunpack.c.h.b16 %v221
    %v909 = vunpack.c.l.b16 %v222
    %v910 = vunpack.c.h.b16 %v222
    %v911 = vunpack.c.l.b16 %v223
    %v912 = vunpack.c.h.b16 %v223
    %v913 = vunpack.c.l.b16 %v224
    %v914 = vunpack.c.h.b16 %v224
    %v915 = vunpack.c.l.b16 %v225
    %v916 = vunpack.c.h.b16 %v225
    %v917 = vunpack.c.l.b16 %v226
    %v918 = vunpack.c.h.b16 %v226
    %v919 = vunpack.c.l.b16 %v227
    %v920 = vunpack.c.h.b16 %v227
    %v921 = vunpack.c.l.b16 %v228
    %v922 = vunpack.c.h.b16 %v228
    %v923 = vunpack.c.l.b16 %v229
    %v924 = vunpack.c.h.b16 %v229
    %v925 = vunpack.c.l.b16 %v230
    %v926 = vunpack.c.h.b16 %v230
    %v927 = vunpack.c.l.b16 %v231
    %v928 = vunpack.c.h.b16 %v231
    %v929 = vunpack.c.l.b16 %v232
    %v930 = vunpack.c.h.b16 %v232
    %v931 = vunpack.c.l.b16 %v233
    %v932 = vunpack.c.h.b16 %v233
    %v933 = vunpack.c.l.b16 %v234
    %v934 = vunpack.c.h.b16 %v234
    %v935 = vunpack.c.l.b16 %v235
    %v936 = vunpack.c.h.b16 %v235
    %v937 = vunpack.c.l.b16 %v236
    %v938 = vunpack.c.h.b16 %v236
    %v939 = vunpack.c.l.b16 %v237
    %v940 = vunpack.c.h.b16 %v237
    %v941 = vunpack.c.l.b16 %v238
    %v942 = vunpack.c.h.b16 %v238
    %v943 = vunpack.c.l.b16 %v239
    %v944 = vunpack.c.h.b16 %v239
    %v945 = vunpack.c.l.b16 %v240
    %v946 = vunpack.c.h.b16 %v240
    %v947 = vunpack.c.l.b16 %v241
    %v948 = vunpack.c.h.b16 %v241
    %v949 = vunpack.c.l.b16 %v242
    %v950 = vunpack.c.h.b16 %v242
    %v951 = vunpack.c.l.b16 %v243
    %v952 = vunpack.c.h.b16 %v243
    %v953 = vunpack.c.l.b16 %v244
    %v954 = vunpack.c.h.b16 %v244
    %v955 = vunpack.c.l.b16 %v245
    %v956 = vunpack.c.h.b16 %v245
    %v957 = vunpack.c.l.b16 %v246
    %v958 = vunpack.c.h.b16 %v246
    %v959 = vunpack.c.l.b16 %v247
    %v960 = vunpack.c.h.b16 %v247
    %v961 = vunpack.c.l.b16 %v248
    %v962 = vunpack.c.h.b16 %v248
    %v963 = vunpack.c.l.b16 %v249
    %v964 = vunpack.c.h.b16 %v249
    %v965 = vunpack.c.l.b16 %v250
    %v966 = vunpack.c.h.b16 %v250
    %v967 = vunpack.c.l.b16 %v251
    %v968 = vunpack.c.h.b16 %v251
    %v969 = vunpack.c.l.b16 %v252
    %v970 = vunpack.c.h.b16 %v252
    %v971 = vunpack.c.l.b16 %v253
    %v972 = vunpack.c.h.b16 %v253
    %v973 = vunpack.c.l.b16 %v254
    %v974 = vunpack.c.h.b16 %v254
    %v975 = vunpack.c.l.b16 %v255
    %v976 = vunpack.c.h.b16 %v255
    %v977 = vunpack.c.l.b16 %v256
    %v978 = vunpack.c.h.b16 %v256
    %v979 = vunpack.c.l.b16 %v257
    %v980 = vunpack.c.h.b16 %v257
    %v981 = vunpack.c.l.b16 %v258
    %v982 = vunpack.c.h.b16 %v258
    %v983 = vunpack.c.l.b16 %v259
    %v984 = vunpack.c.h.b16 %v259
    %v985 = vunpack.c.l.b16 %v260
    %v986 = vunpack.c.h.b16 %v260
    %v987 = vunpack.c.l.b16 %v261
    %v988 = vunpack.c.h.b16 %v261
    %v989 = vunpack.c.l.b16 %v262
    %v990 = vunpack.c.h.b16 %v262
    %v991 = vunpack.c.l.b16 %v263
    %v992 = vunpack.c.h.b16 %v263
    %v993 = vunpack.c.l.b16 %v264
    %v994 = vunpack.c.h.b16 %v264
    %v995 = vunpack.c.l.b16 %v265
    %v996 = vunpack.c.h.b16 %v265
    %v997 = vunpack.c.l.b16 %v266
    %v998 = vunpack.c.h.b16 %v266
    %v999 = vunpack.c.l.b16 %v267
    %v1000 = vunpack.c.h.b16 %v267
    %v1001 = vunpack.c.l.b16 %v268
    %v1002 = vunpack.c.h.b16 %v268
    %v1003 = vunpack.c.l.b16 %v269
    %v1004 = vunpack.c.h.b16 %v269
    %v1005 = vunpack.c.l.b16 %v270
    %v1006 = vunpack.c.h.b16 %v270
    %v1007 = vunpack.c.l.b16 %v271
    %v1008 = vunpack.c.h.b16 %v271
    %v1009 = vunpack.c.l.b16 %v272
    %v1010 = vunpack.c.h.b16 %v272
    %v1011 = vunpack.c.l.b16 %v273
    %v1012 = vunpack.c.h.b16 %v273
    %v1013 = vunpack.c.l.b16 %v274
    %v1014 = vunpack.c.h.b16 %v274
    %v1015 = vunpack.c.l.b16 %v275
    %v1016 = vunpack.c.h.b16 %v275
    %v1017 = vunpack.c.l.b16 %v276
    %v1018 = vunpack.c.h.b16 %v276
    %v1019 = vunpack.c.l.b16 %v277
    %v1020 = vunpack.c.h.b16 %v277
    %v1021 = vunpack.c.l.b16 %v278
    %v1022 = vunpack.c.h.b16 %v278
    %v1023 = vunpack.c.l.b16 %v279
    %v1024 = vunpack.c.h.b16 %v279
    %v1025 = vunpack.c.l.b16 %v280
    %v1026 = vunpack.c.h.b16 %v280
    %v1027 = vunpack.c.l.b16 %v281
    %v1028 = vunpack.c.h.b16 %v281
    %v1029 = vunpack.c.l.b16 %v282
    %v1030 = vunpack.c.h.b16 %v282
    %v1031 = vunpack.c.l.b16 %v283
    %v1032 = vunpack.c.h.b16 %v283
    %v1033 = vunpack.c.l.b16 %v284
    %v1034 = vunpack.c.h.b16 %v284
    %v1035 = vunpack.c.l.b16 %v285
    %v1036 = vunpack.c.h.b16 %v285
    %v1037 = vunpack.c.l.b16 %v286
    %v1038 = vunpack.c.h.b16 %v286
    %v1039 = vunpack.c.l.b16 %v287
    %v1040 = vunpack.c.h.b16 %v287
    %v1041 = vunpack.c.l.b16 %v288
    %v1042 = vunpack.c.h.b16 %v288
    %v1043 = vunpack.c.l.b16 %v289
    %v1044 = vunpack.c.h.b16 %v289
    %v1045 = vunpack.c.l.b16 %v290
    %v1046 = vunpack.c.h.b16 %v290
    %v1047 = vunpack.c.l.b16 %v291
    %v1048 = vunpack.c.h.b16 %v291
    %v1049 = vunpack.c.l.b16 %v292
    %v1050 = vunpack.c.h.b16 %v292
    %v1051 = vunpack.c.l.b16 %v293
    %v1052 = vunpack.c.h.b16 %v293
    %v1053 = vunpack.c.l.b16 %v294
    %v1054 = vunpack.c.h.b16 %v294
    %v1055 = vunpack.c.l.b16 %v295
    %v1056 = vunpack.c.h.b16 %v295
    %v1057 = vunpack.c.l.b16 %v296
    %v1058 = vunpack.c.h.b16 %v296
    %v1059 = vunpack.c.l.b16 %v297
    %v1060 = vunpack.c.h.b16 %v297
    %v1061 = vunpack.c.l.b16 %v298
    %v1062 = vunpack.c.h.b16 %v298
    %v1063 = vunpack.c.l.b16 %v299
    %v1064 = vunpack.c.h.b16 %v299
    %v1065 = vunpack.c.l.b16 %v300
    %v1066 = vunpack.c.h.b16 %v300
    %v1067 = vunpack.c.l.b16 %v301
    %v1068 = vunpack.c.h.b16 %v301
    %v1069 = vunpack.c.l.b16 %v302
    %v1070 = vunpack.c.h.b16 %v302
    %v1071 = vunpack.c.l.b16 %v303
    %v1072 = vunpack.c.h.b16 %v303
    %v1073 = vunpack.c.l.b16 %v304
    %v1074 = vunpack.c.h.b16 %v304
    %v1075 = vunpack.c.l.b16 %v305
    %v1076 = vunpack.c.h.b16 %v305
    %v1077 = vunpack.c.l.b16 %v306
    %v1078 = vunpack.c.h.b16 %v306
    %v1079 = vunpack.c.l.b16 %v307
    %v1080 = vunpack.c.h.b16 %v307
    %v1081 = vunpack.c.l.b16 %v308
    %v1082 = vunpack.c.h.b16 %v308
    %v1083 = vunpack.c.l.b16 %v309
    %v1084 = vunpack.c.h.b16 %v309
    %v1085 = vunpack.c.l.b16 %v310
    %v1086 = vunpack.c.h.b16 %v310
    %v1087 = vunpack.c.l.b16 %v311
    %v1088 = vunpack.c.h.b16 %v311
    %v1089 = vunpack.c.l.b16 %v312
    %v1090 = vunpack.c.h.b16 %v312
    %v1091 = vunpack.c.l.b16 %v313
    %v1092 = vunpack.c.h.b16 %v313
    %v1093 = vunpack.c.l.b16 %v314
    %v1094 = vunpack.c.h.b16 %v314
    %v1095 = vunpack.c.l.b16 %v315
    %v1096 = vunpack.c.h.b16 %v315
    %v1097 = vunpack.c.l.b16 %v316
    %v1098 = vunpack.c.h.b16 %v316
    %v1099 = vunpack.c.l.b16 %v317
    %v1100 = vunpack.c.h.b16 %v317
    %v1101 = vunpack.c.l.b16 %v318
    %v1102 = vunpack.c.h.b16 %v318
    %v1103 = vunpack.c.l.b16 %v319
    %v1104 = vunpack.c.h.b16 %v319
    %v1105 = vunpack.c.l.b16 %v320
    %v1106 = vunpack.c.h.b16 %v320
    %v1107 = vunpack.c.l.b16 %v321
    %v1108 = vunpack.c.h.b16 %v321
    %v1109 = vunpack.c.l.b16 %v322
    %v1110 = vunpack.c.h.b16 %v322
    %v1111 = vunpack.c.l.b16 %v323
    %v1112 = vunpack.c.h.b16 %v323
    %v1113 = vunpack.c.l.b16 %v324
    %v1114 = vunpack.c.h.b16 %v324
    %v1115 = vunpack.c.l.b16 %v325
    %v1116 = vunpack.c.h.b16 %v325
    %v1117 = vunpack.c.l.b16 %v326
    %v1118 = vunpack.c.h.b16 %v326
    %v1119 = vunpack.c.l.b16 %v327
    %v1120 = vunpack.c.h.b16 %v327
    %v1121 = vunpack.c.l.b16 %v328
    %v1122 = vunpack.c.h.b16 %v328
    %v1123 = vunpack.c.l.b16 %v329
    %v1124 = vunpack.c.h.b16 %v329
    %v1125 = vunpack.c.l.b16 %v330
    %v1126 = vunpack.c.h.b16 %v330
    %v1127 = vpack.c.b16 %v619, %v615
    %v1128 = vpack.c.b16 %v620, %v616
    %v1129 = vpack.c.b16 %v621, %v617
    %v1130 = vpack.c.b16 %v622, %v618
    %v1131 = vpack.c.b16 %v627, %v623
    %v1132 = vpack.c.b16 %v628, %v624
    %v1133 = vpack.c.b16 %v629, %v625
    %v1134 = vpack.c.b16 %v630, %v626
    %v1135 = vpack.c.b16 %v635, %v631
    %v1136 = vpack.c.b16 %v636, %v632
    %v1137 = vpack.c.b16 %v637, %v633
    %v1138 = vpack.c.b16 %v638, %v634
    %v1139 = vpack.c.b16 %v643, %v639
    %v1140 = vpack.c.b16 %v644, %v640
    %v1141 = vpack.c.b16 %v645, %v641
    %v1142 = vpack.c.b16 %v646, %v642
    %v1143 = vpack.c.b16 %v651, %v647
    %v1144 = vpack.c.b16 %v652, %v648
    %v1145 = vpack.c.b16 %v653, %v649
    %v1146 = vpack.c.b16 %v654, %v650
    %v1147 = vpack.c.b16 %v659, %v655
    %v1148 = vpack.c.b16 %v660, %v656
    %v1149 = vpack.c.b16 %v661, %v657
    %v1150 = vpack.c.b16 %v662, %v658
    %v1151 = vpack.c.b16 %v667, %v663
    %v1152 = vpack.c.b16 %v668, %v664
    %v1153 = vpack.c.b16 %v669, %v665
    %v1154 = vpack.c.b16 %v670, %v666
    %v1155 = vpack.c.b16 %v675, %v671
    %v1156 = vpack.c.b16 %v676, %v672
    %v1157 = vpack.c.b16 %v677, %v673
    %v1158 = vpack.c.b16 %v678, %v674
    %v1159 = vpack.c.b16 %v683, %v679
    %v1160 = vpack.c.b16 %v684, %v680
    %v1161 = vpack.c.b16 %v685, %v681
    %v1162 = vpack.c.b16 %v686, %v682
    %v1163 = vpack.c.b16 %v691, %v687
    %v1164 = vpack.c.b16 %v692, %v688
    %v1165 = vpack.c.b16 %v693, %v689
    %v1166 = vpack.c.b16 %v694, %v690
    %v1167 = vpack.c.b16 %v699, %v695
    %v1168 = vpack.c.b16 %v700, %v696
    %v1169 = vpack.c.b16 %v701, %v697
    %v1170 = vpack.c.b16 %v702, %v698
    %v1171 = vpack.c.b16 %v707, %v703
    %v1172 = vpack.c.b16 %v708, %v704
    %v1173 = vpack.c.b16 %v709, %v705
    %v1174 = vpack.c.b16 %v710, %v706
    %v1175 = vpack.c.b16 %v715, %v711
    %v1176 = vpack.c.b16 %v716, %v712
    %v1177 = vpack.c.b16 %v717, %v713
    %v1178 = vpack.c.b16 %v718, %v714
    %v1179 = vpack.c.b16 %v723, %v719
    %v1180 = vpack.c.b16 %v724, %v720
    %v1181 = vpack.c.b16 %v725, %v721
    %v1182 = vpack.c.b16 %v726, %v722
    %v1183 = vpack.c.b16 %v731, %v727
    %v1184 = vpack.c.b16 %v732, %v728
    %v1185 = vpack.c.b16 %v733, %v729
    %v1186 = vpack.c.b16 %v734, %v730
    %v1187 = vpack.c.b16 %v739, %v735
    %v1188 = vpack.c.b16 %v740, %v736
    %v1189 = vpack.c.b16 %v741, %v737
    %v1190 = vpack.c.b16 %v742, %v738
    %v1191 = vpack.c.b16 %v747, %v743
    %v1192 = vpack.c.b16 %v748, %v744
    %v1193 = vpack.c.b16 %v749, %v745
    %v1194 = vpack.c.b16 %v750, %v746
    %v1195 = vpack.c.b16 %v755, %v751
    %v1196 = vpack.c.b16 %v756, %v752
    %v1197 = vpack.c.b16 %v757, %v753
    %v1198 = vpack.c.b16 %v758, %v754
    %v1199 = vpack.c.b16 %v763, %v759
    %v1200 = vpack.c.b16 %v764, %v760
    %v1201 = vpack.c.b16 %v765, %v761
    %v1202 = vpack.c.b16 %v766, %v762
    %v1203 = vpack.c.b16 %v771, %v767
    %v1204 = vpack.c.b16 %v772, %v768
    %v1205 = vpack.c.b16 %v773, %v769
    %v1206 = vpack.c.b16 %v774, %v770
    %v1207 = vpack.c.b16 %v779, %v775
    %v1208 = vpack.c.b16 %v780, %v776
    %v1209 = vpack.c.b16 %v781, %v777
    %v1210 = vpack.c.b16 %v782, %v778
    %v1211 = vpack.c.b16 %v787, %v783
    %v1212 = vpack.c.b16 %v788, %v784
    %v1213 = vpack.c.b16 %v789, %v785
    %v1214 = vpack.c.b16 %v790, %v786
    %v1215 = vpack.c.b16 %v795, %v791
    %v1216 = vpack.c.b16 %v796, %v792
    %v1217 = vpack.c.b16 %v797, %v793
    %v1218 = vpack.c.b16 %v798, %v794
    %v1219 = vpack.c.b16 %v803, %v799
    %v1220 = vpack.c.b16 %v804, %v800
    %v1221 = vpack.c.b16 %v805, %v801
    %v1222 = vpack.c.b16 %v806, %v802
    %v1223 = vpack.c.b16 %v811, %v807
    %v1224 = vpack.c.b16 %v812, %v808
    %v1225 = vpack.c.b16 %v813, %v809
    %v1226 = vpack.c.b16 %v814, %v810
    %v1227 = vpack.c.b16 %v819, %v815
    %v1228 = vpack.c.b16 %v820, %v816
    %v1229 = vpack.c.b16 %v821, %v817
    %v1230 = vpack.c.b16 %v822, %v818
    %v1231 = vpack.c.b16 %v827, %v823
    %v1232 = vpack.c.b16 %v828, %v824
    %v1233 = vpack.c.b16 %v829, %v825
    %v1234 = vpack.c.b16 %v830, %v826
    %v1235 = vpack.c.b16 %v835, %v831
    %v1236 = vpack.c.b16 %v836, %v832
    %v1237 = vpack.c.b16 %v837, %v833
    %v1238 = vpack.c.b16 %v838, %v834
    %v1239 = vpack.c.b16 %v843, %v839
    %v1240 = vpack.c.b16 %v844, %v840
    %v1241 = vpack.c.b16 %v845, %v841
    %v1242 = vpack.c.b16 %v846, %v842
    %v1243 = vpack.c.b16 %v851, %v847
    %v1244 = vpack.c.b16 %v852, %v848
    %v1245 = vpack.c.b16 %v853, %v849
    %v1246 = vpack.c.b16 %v854, %v850
    %v1247 = vpack.c.b16 %v859, %v855
    %v1248 = vpack.c.b16 %v860, %v856
    %v1249 = vpack.c.b16 %v861, %v857
    %v1250 = vpack.c.b16 %v862, %v858
    %v1251 = vpack.c.b16 %v867, %v863
    %v1252 = vpack.c.b16 %v868, %v864
    %v1253 = vpack.c.b16 %v869, %v865
    %v1254 = vpack.c.b16 %v870, %v866
    %v1255 = vpack.c.b16 %v875, %v871
    %v1256 = vpack.c.b16 %v876, %v872
    %v1257 = vpack.c.b16 %v877, %v873
    %v1258 = vpack.c.b16 %v878, %v874
    %v1259 = vpack.c.b16 %v883, %v879
    %v1260 = vpack.c.b16 %v884, %v880
    %v1261 = vpack.c.b16 %v885, %v881
    %v1262 = vpack.c.b16 %v886, %v882
    %v1263 = vpack.c.b16 %v891, %v887
    %v1264 = vpack.c.b16 %v892, %v888
    %v1265 = vpack.c.b16 %v893, %v889
    %v1266 = vpack.c.b16 %v894, %v890
    %v1267 = vpack.c.b16 %v899, %v895
    %v1268 = vpack.c.b16 %v900, %v896
    %v1269 = vpack.c.b16 %v901, %v897
    %v1270 = vpack.c.b16 %v902, %v898
    %v1271 = vpack.c.b16 %v907, %v903
    %v1272 = vpack.c.b16 %v908, %v904
    %v1273 = vpack.c.b16 %v909, %v905
    %v1274 = vpack.c.b16 %v910, %v906
    %v1275 = vpack.c.b16 %v915, %v911
    %v1276 = vpack.c.b16 %v916, %v912
    %v1277 = vpack.c.b16 %v917, %v913
    %v1278 = vpack.c.b16 %v918, %v914
    %v1279 = vpack.c.b16 %v923, %v919
    %v1280 = vpack.c.b16 %v924, %v920
    %v1281 = vpack.c.b16 %v925, %v921
    %v1282 = vpack.c.b16 %v926, %v922
    %v1283 = vpack.c.b16 %v931, %v927
    %v1284 = vpack.c.b16 %v932, %v928
    %v1285 = vpack.c.b16 %v933, %v929
    %v1286 = vpack.c.b16 %v934, %v930
    %v1287 = vpack.c.b16 %v939, %v935
    %v1288 = vpack.c.b16 %v940, %v936
    %v1289 = vpack.c.b16 %v941, %v937
    %v1290 = vpack.c.b16 %v942, %v938
    %v1291 = vpack.c.b16 %v947, %v943
    %v1292 = vpack.c.b16 %v948, %v944
    %v1293 = vpack.c.b16 %v949, %v945
    %v1294 = vpack.c.b16 %v950, %v946
    %v1295 = vpack.c.b16 %v955, %v951
    %v1296 = vpack.c.b16 %v956, %v952
    %v1297 = vpack.c.b16 %v957, %v953
    %v1298 = vpack.c.b16 %v958, %v954
    %v1299 = vpack.c.b16 %v963, %v959
    %v1300 = vpack.c.b16 %v964, %v960
    %v1301 = vpack.c.b16 %v965, %v961
    %v1302 = vpack.c.b16 %v966, %v962
    %v1303 = vpack.c.b16 %v971, %v967
    %v1304 = vpack.c.b16 %v972, %v968
    %v1305 = vpack.c.b16 %v973, %v969
    %v1306 = vpack.c.b16 %v974, %v970
    %v1307 = vpack.c.b16 %v979, %v975
    %v1308 = vpack.c.b16 %v980, %v976
    %v1309 = vpack.c.b16 %v981, %v977
    %v1310 = vpack.c.b16 %v982, %v978
    %v1311 = vpack.c.b16 %v987, %v983
    %v1312 = vpack.c.b16 %v988, %v984
    %v1313 = vpack.c.b16 %v989, %v985
    %v1314 = vpack.c.b16 %v990, %v986
    %v1315 = vpack.c.b16 %v995, %v991
    %v1316 = vpack.c.b16 %v996, %v992
    %v1317 = vpack.c.b16 %v997, %v993
    %v1318 = vpack.c.b16 %v998, %v994
    %v1319 = vpack.c.b16 %v1003, %v999
    %v1320 = vpack.c.b16 %v1004, %v1000
    %v1321 = vpack.c.b16 %v1005, %v1001
    %v1322 = vpack.c.b16 %v1006, %v1002
    %v1323 = vpack.c.b16 %v1011, %v1007
    %v1324 = vpack.c.b16 %v1012, %v1008
    %v1325 = vpack.c.b16 %v1013, %v1009
    %v1326 = vpack.c.b16 %v1014, %v1010
    %v1327 = vpack.c.b16 %v1019, %v1015
    %v1328 = vpack.c.b16 %v1020, %v1016
    %v1329 = vpack.c.b16 %v1021, %v1017
    %v1330 = vpack.c.b16 %v1022, %v1018
    %v1331 = vpack.c.b16 %v1027, %v1023
    %v1332 = vpack.c.b16 %v1028, %v1024
    %v1333 = vpack.c.b16 %v1029, %v1025
    %v1334 = vpack.c.b16 %v1030, %v1026
    %v1335 = vpack.c.b16 %v1035, %v1031
    %v1336 = vpack.c.b16 %v1036, %v1032
    %v1337 = vpack.c.b16 %v1037, %v1033
    %v1338 = vpack.c.b16 %v1038, %v1034
    %v1339 = vpack.c.b16 %v1043, %v1039
    %v1340 = vpack.c.b16 %v1044, %v1040
    %v1341 = vpack.c.b16 %v1045, %v1041
    %v1342 = vpack.c.b16 %v1046, %v1042
    %v1343 = vpack.c.b16 %v1051, %v1047
    %v1344 = vpack.c.b16 %v1052, %v1048
    %v1345 = vpack.c.b16 %v1053, %v1049
    %v1346 = vpack.c.b16 %v1054, %v1050
    %v1347 = vpack.c.b16 %v1059, %v1055
    %v1348 = vpack.c.b16 %v1060, %v1056
    %v1349 = vpack.c.b16 %v1061, %v1057
    %v1350 = vpack.c.b16 %v1062, %v1058
    %v1351 = vpack.c.b16 %v1067, %v1063
    %v1352 = vpack.c.b16 %v1068, %v1064
    %v1353 = vpack.c.b16 %v1069, %v1065
    %v1354 = vpack.c.b16 %v1070, %v1066
    %v1355 = vpack.c.b16 %v1075, %v1071
    %v1356 = vpack.c.b16 %v1076, %v1072
    %v1357 = vpack.c.b16 %v1077, %v1073
    %v1358 = vpack.c.b16 %v1078, %v1074
    %v1359 = vpack.c.b16 %v1083, %v1079
    %v1360 = vpack.c.b16 %v1084, %v1080
    %v1361 = vpack.c.b16 %v1085, %v1081
    %v1362 = vpack.c.b16 %v1086, %v1082
    %v1363 = vpack.c.b16 %v1091, %v1087
    %v1364 = vpack.c.b16 %v1092, %v1088
    %v1365 = vpack.c.b16 %v1093, %v1089
    %v1366 = vpack.c.b16 %v1094, %v1090
    %v1367 = vpack.c.b16 %v1099, %v1095
    %v1368 = vpack.c.b16 %v1100, %v1096
    %v1369 = vpack.c.b16 %v1101, %v1097
    %v1370 = vpack.c.b16 %v1102, %v1098
    %v1371 = vpack.c.b16 %v1107, %v1103
    %v1372 = vpack.c.b16 %v1108, %v1104
    %v1373 = vpack.c.b16 %v1109, %v1105
    %v1374 = vpack.c.b16 %v1110, %v1106
    %v1375 = vpack.c.b16 %v1115, %v1111
    %v1376 = vpack.c.b16 %v1116, %v1112
    %v1377 = vpack.c.b16 %v1117, %v1113
    %v1378 = vpack.c.b16 %v1118, %v1114
    %v1379 = vpack.c.b16 %v1123, %v1119
    %v1380 = vpack.c.b16 %v1124, %v1120
    %v1381 = vpack.c.b16 %v1125, %v1121
    %v1382 = vpack.c.b16 %v1126, %v1122
    %1639 = vmatpush.bf16.msra.mxu0 %v1155
    %1640 = vmatpush.bf16.msra.mxu0 %v1151
    %1641 = vmatpush.bf16.msra.mxu0 %v1147
    %1642 = vmatpush.bf16.msra.mxu0 %v1143
    %1643 = vmatpush.bf16.msra.mxu0 %v1139
    %1644 = vmatpush.bf16.msra.mxu0 %v1135
    %1645 = vmatpush.bf16.msra.mxu0 %v1131
    %1646 = vmatpush.bf16.msra.mxu0 %v1127
    %1647 = vmatmul.bf16.gmra.mxu0 %v343
    %v1648 = vpop.f32.mrf.mxu0
    %v1649 = vadd.f32 0.0, %v1648
    %v1650 = vpop.f32.mrf.mxu0
    %1651 = vdwg.mxu0
    %1652 = vmatpush.bf16.msra.mxu0 %v1187
    %1653 = vmatpush.bf16.msra.mxu0 %v1183
    %1654 = vmatpush.bf16.msra.mxu0 %v1179
    %1655 = vmatpush.bf16.msra.mxu0 %v1175
    %1656 = vmatpush.bf16.msra.mxu0 %v1171
    %1657 = vmatpush.bf16.msra.mxu0 %v1167
    %1658 = vmatpush.bf16.msra.mxu0 %v1163
    %1659 = vmatpush.bf16.msra.mxu0 %v1159
    %1660 = vmatmul.bf16.gmra.mxu0 %v344
    %v1661 = vpop.f32.mrf.mxu0
    %v1662 = vadd.f32 %v1649, %v1661
    %v1663 = vpop.f32.mrf.mxu0
    %1664 = vdwg.mxu0
    %1665 = vmatpush.bf16.msra.mxu0 %v1219
    %1666 = vmatpush.bf16.msra.mxu0 %v1215
    %1667 = vmatpush.bf16.msra.mxu0 %v1211
    %1668 = vmatpush.bf16.msra.mxu0 %v1207
    %1669 = vmatpush.bf16.msra.mxu0 %v1203
    %1670 = vmatpush.bf16.msra.mxu0 %v1199
    %1671 = vmatpush.bf16.msra.mxu0 %v1195
    %1672 = vmatpush.bf16.msra.mxu0 %v1191
    %1673 = vmatmul.bf16.gmra.mxu0 %v345
    %v1674 = vpop.f32.mrf.mxu0
    %v1675 = vadd.f32 %v1662, %v1674
    %v1676 = vpop.f32.mrf.mxu0
    %1677 = vdwg.mxu0
    %1678 = vmatpush.bf16.msra.mxu0 %v1251
    %1679 = vmatpush.bf16.msra.mxu0 %v1247
    %1680 = vmatpush.bf16.msra.mxu0 %v1243
    %1681 = vmatpush.bf16.msra.mxu0 %v1239
    %1682 = vmatpush.bf16.msra.mxu0 %v1235
    %1683 = vmatpush.bf16.msra.mxu0 %v1231
    %1684 = vmatpush.bf16.msra.mxu0 %v1227
    %1685 = vmatpush.bf16.msra.mxu0 %v1223
    %1686 = vmatmul.bf16.gmra.mxu0 %v346
    %v1687 = vpop.f32.mrf.mxu0
    %v1688 = vadd.f32 %v1675, %v1687
    %v1689 = vpop.f32.mrf.mxu0
    %1690 = vdwg.mxu0
    %1691 = vmatpush.bf16.msra.mxu0 %v1283
    %1692 = vmatpush.bf16.msra.mxu0 %v1279
    %1693 = vmatpush.bf16.msra.mxu0 %v1275
    %1694 = vmatpush.bf16.msra.mxu0 %v1271
    %1695 = vmatpush.bf16.msra.mxu0 %v1267
    %1696 = vmatpush.bf16.msra.mxu0 %v1263
    %1697 = vmatpush.bf16.msra.mxu0 %v1259
    %1698 = vmatpush.bf16.msra.mxu0 %v1255
    %1699 = vmatmul.bf16.gmra.mxu0 %v347
    %v1700 = vpop.f32.mrf.mxu0
    %v1701 = vadd.f32 %v1688, %v1700
    %v1702 = vpop.f32.mrf.mxu0
    %1703 = vdwg.mxu0
    %1704 = vmatpush.bf16.msra.mxu0 %v1315
    %1705 = vmatpush.bf16.msra.mxu0 %v1311
    %1706 = vmatpush.bf16.msra.mxu0 %v1307
    %1707 = vmatpush.bf16.msra.mxu0 %v1303
    %1708 = vmatpush.bf16.msra.mxu0 %v1299
    %1709 = vmatpush.bf16.msra.mxu0 %v1295
    %1710 = vmatpush.bf16.msra.mxu0 %v1291
    %1711 = vmatpush.bf16.msra.mxu0 %v1287
    %1712 = vmatmul.bf16.gmra.mxu0 %v348
    %v1713 = vpop.f32.mrf.mxu0
    %v1714 = vadd.f32 %v1701, %v1713
    %v1715 = vpop.f32.mrf.mxu0
    %1716 = vdwg.mxu0
    %1717 = vmatpush.bf16.msra.mxu0 %v1347
    %1718 = vmatpush.bf16.msra.mxu0 %v1343
    %1719 = vmatpush.bf16.msra.mxu0 %v1339
    %1720 = vmatpush.bf16.msra.mxu0 %v1335
    %1721 = vmatpush.bf16.msra.mxu0 %v1331
    %1722 = vmatpush.bf16.msra.mxu0 %v1327
    %1723 = vmatpush.bf16.msra.mxu0 %v1323
    %1724 = vmatpush.bf16.msra.mxu0 %v1319
    %1725 = vmatmul.bf16.gmra.mxu0 %v349
    %v1726 = vpop.f32.mrf.mxu0
    %v1727 = vadd.f32 %v1714, %v1726
    %v1728 = vpop.f32.mrf.mxu0
    %1729 = vdwg.mxu0
    %1730 = vmatpush.bf16.msra.mxu0 %v1379
    %1731 = vmatpush.bf16.msra.mxu0 %v1375
    %1732 = vmatpush.bf16.msra.mxu0 %v1371
    %1733 = vmatpush.bf16.msra.mxu0 %v1367
    %1734 = vmatpush.bf16.msra.mxu0 %v1363
    %1735 = vmatpush.bf16.msra.mxu0 %v1359
    %1736 = vmatpush.bf16.msra.mxu0 %v1355
    %1737 = vmatpush.bf16.msra.mxu0 %v1351
    %1738 = vmatmul.bf16.gmra.mxu0 %v350
    %v1739 = vpop.f32.mrf.mxu0
    %v1740 = vadd.f32 %v1727, %v1739
    %v1741 = vpop.f32.mrf.mxu0
    %1742 = vdwg.mxu0
    %1743 = vmatpush.bf16.msra.mxu0 %v1156
    %1744 = vmatpush.bf16.msra.mxu0 %v1152
    %1745 = vmatpush.bf16.msra.mxu0 %v1148
    %1746 = vmatpush.bf16.msra.mxu0 %v1144
    %1747 = vmatpush.bf16.msra.mxu0 %v1140
    %1748 = vmatpush.bf16.msra.mxu0 %v1136
    %1749 = vmatpush.bf16.msra.mxu0 %v1132
    %1750 = vmatpush.bf16.msra.mxu0 %v1128
    %1751 = vmatmul.bf16.gmra.mxu0 %v343
    %v1752 = vpop.f32.mrf.mxu0
    %v1753 = vadd.f32 0.0, %v1752
    %v1754 = vpop.f32.mrf.mxu0
    %1755 = vdwg.mxu0
    %1756 = vmatpush.bf16.msra.mxu0 %v1188
    %1757 = vmatpush.bf16.msra.mxu0 %v1184
    %1758 = vmatpush.bf16.msra.mxu0 %v1180
    %1759 = vmatpush.bf16.msra.mxu0 %v1176
    %1760 = vmatpush.bf16.msra.mxu0 %v1172
    %1761 = vmatpush.bf16.msra.mxu0 %v1168
    %1762 = vmatpush.bf16.msra.mxu0 %v1164
    %1763 = vmatpush.bf16.msra.mxu0 %v1160
    %1764 = vmatmul.bf16.gmra.mxu0 %v344
    %v1765 = vpop.f32.mrf.mxu0
    %v1766 = vadd.f32 %v1753, %v1765
    %v1767 = vpop.f32.mrf.mxu0
    %1768 = vdwg.mxu0
    %1769 = vmatpush.bf16.msra.mxu0 %v1220
    %1770 = vmatpush.bf16.msra.mxu0 %v1216
    %1771 = vmatpush.bf16.msra.mxu0 %v1212
    %1772 = vmatpush.bf16.msra.mxu0 %v1208
    %1773 = vmatpush.bf16.msra.mxu0 %v1204
    %1774 = vmatpush.bf16.msra.mxu0 %v1200
    %1775 = vmatpush.bf16.msra.mxu0 %v1196
    %1776 = vmatpush.bf16.msra.mxu0 %v1192
    %1777 = vmatmul.bf16.gmra.mxu0 %v345
    %v1778 = vpop.f32.mrf.mxu0
    %v1779 = vadd.f32 %v1766, %v1778
    %v1780 = vpop.f32.mrf.mxu0
    %1781 = vdwg.mxu0
    %1782 = vmatpush.bf16.msra.mxu0 %v1252
    %1783 = vmatpush.bf16.msra.mxu0 %v1248
    %1784 = vmatpush.bf16.msra.mxu0 %v1244
    %1785 = vmatpush.bf16.msra.mxu0 %v1240
    %1786 = vmatpush.bf16.msra.mxu0 %v1236
    %1787 = vmatpush.bf16.msra.mxu0 %v1232
    %1788 = vmatpush.bf16.msra.mxu0 %v1228
    %1789 = vmatpush.bf16.msra.mxu0 %v1224
    %1790 = vmatmul.bf16.gmra.mxu0 %v346
    %v1791 = vpop.f32.mrf.mxu0
    %v1792 = vadd.f32 %v1779, %v1791
    %v1793 = vpop.f32.mrf.mxu0
    %1794 = vdwg.mxu0
    %1795 = vmatpush.bf16.msra.mxu0 %v1284
    %1796 = vmatpush.bf16.msra.mxu0 %v1280
    %1797 = vmatpush.bf16.msra.mxu0 %v1276
    %1798 = vmatpush.bf16.msra.mxu0 %v1272
    %1799 = vmatpush.bf16.msra.mxu0 %v1268
    %1800 = vmatpush.bf16.msra.mxu0 %v1264
    %1801 = vmatpush.bf16.msra.mxu0 %v1260
    %1802 = vmatpush.bf16.msra.mxu0 %v1256
    %1803 = vmatmul.bf16.gmra.mxu0 %v347
    %v1804 = vpop.f32.mrf.mxu0
    %v1805 = vadd.f32 %v1792, %v1804
    %v1806 = vpop.f32.mrf.mxu0
    %1807 = vdwg.mxu0
    %1808 = vmatpush.bf16.msra.mxu0 %v1316
    %1809 = vmatpush.bf16.msra.mxu0 %v1312
    %1810 = vmatpush.bf16.msra.mxu0 %v1308
    %1811 = vmatpush.bf16.msra.mxu0 %v1304
    %1812 = vmatpush.bf16.msra.mxu0 %v1300
    %1813 = vmatpush.bf16.msra.mxu0 %v1296
    %1814 = vmatpush.bf16.msra.mxu0 %v1292
    %1815 = vmatpush.bf16.msra.mxu0 %v1288
    %1816 = vmatmul.bf16.gmra.mxu0 %v348
    %v1817 = vpop.f32.mrf.mxu0
    %v1818 = vadd.f32 %v1805, %v1817
    %v1819 = vpop.f32.mrf.mxu0
    %1820 = vdwg.mxu0
    %1821 = vmatpush.bf16.msra.mxu0 %v1348
    %1822 = vmatpush.bf16.msra.mxu0 %v1344
    %1823 = vmatpush.bf16.msra.mxu0 %v1340
    %1824 = vmatpush.bf16.msra.mxu0 %v1336
    %1825 = vmatpush.bf16.msra.mxu0 %v1332
    %1826 = vmatpush.bf16.msra.mxu0 %v1328
    %1827 = vmatpush.bf16.msra.mxu0 %v1324
    %1828 = vmatpush.bf16.msra.mxu0 %v1320
    %1829 = vmatmul.bf16.gmra.mxu0 %v349
    %v1830 = vpop.f32.mrf.mxu0
    %v1831 = vadd.f32 %v1818, %v1830
    %v1832 = vpop.f32.mrf.mxu0
    %1833 = vdwg.mxu0
    %1834 = vmatpush.bf16.msra.mxu0 %v1380
    %1835 = vmatpush.bf16.msra.mxu0 %v1376
    %1836 = vmatpush.bf16.msra.mxu0 %v1372
    %1837 = vmatpush.bf16.msra.mxu0 %v1368
    %1838 = vmatpush.bf16.msra.mxu0 %v1364
    %1839 = vmatpush.bf16.msra.mxu0 %v1360
    %1840 = vmatpush.bf16.msra.mxu0 %v1356
    %1841 = vmatpush.bf16.msra.mxu0 %v1352
    %1842 = vmatmul.bf16.gmra.mxu0 %v350
    %v1843 = vpop.f32.mrf.mxu0
    %v1844 = vadd.f32 %v1831, %v1843
    %v1845 = vpop.f32.mrf.mxu0
    %1846 = vdwg.mxu0
    %1847 = vmatpush.bf16.msra.mxu0 %v1157
    %1848 = vmatpush.bf16.msra.mxu0 %v1153
    %1849 = vmatpush.bf16.msra.mxu0 %v1149
    %1850 = vmatpush.bf16.msra.mxu0 %v1145
    %1851 = vmatpush.bf16.msra.mxu0 %v1141
    %1852 = vmatpush.bf16.msra.mxu0 %v1137
    %1853 = vmatpush.bf16.msra.mxu0 %v1133
    %1854 = vmatpush.bf16.msra.mxu0 %v1129
    %1855 = vmatmul.bf16.gmra.mxu0 %v343
    %v1856 = vpop.f32.mrf.mxu0
    %v1857 = vadd.f32 0.0, %v1856
    %v1858 = vpop.f32.mrf.mxu0
    %1859 = vdwg.mxu0
    %1860 = vmatpush.bf16.msra.mxu0 %v1189
    %1861 = vmatpush.bf16.msra.mxu0 %v1185
    %1862 = vmatpush.bf16.msra.mxu0 %v1181
    %1863 = vmatpush.bf16.msra.mxu0 %v1177
    %1864 = vmatpush.bf16.msra.mxu0 %v1173
    %1865 = vmatpush.bf16.msra.mxu0 %v1169
    %1866 = vmatpush.bf16.msra.mxu0 %v1165
    %1867 = vmatpush.bf16.msra.mxu0 %v1161
    %1868 = vmatmul.bf16.gmra.mxu0 %v344
    %v1869 = vpop.f32.mrf.mxu0
    %v1870 = vadd.f32 %v1857, %v1869
    %v1871 = vpop.f32.mrf.mxu0
    %1872 = vdwg.mxu0
    %1873 = vmatpush.bf16.msra.mxu0 %v1221
    %1874 = vmatpush.bf16.msra.mxu0 %v1217
    %1875 = vmatpush.bf16.msra.mxu0 %v1213
    %1876 = vmatpush.bf16.msra.mxu0 %v1209
    %1877 = vmatpush.bf16.msra.mxu0 %v1205
    %1878 = vmatpush.bf16.msra.mxu0 %v1201
    %1879 = vmatpush.bf16.msra.mxu0 %v1197
    %1880 = vmatpush.bf16.msra.mxu0 %v1193
    %1881 = vmatmul.bf16.gmra.mxu0 %v345
    %v1882 = vpop.f32.mrf.mxu0
    %v1883 = vadd.f32 %v1870, %v1882
    %v1884 = vpop.f32.mrf.mxu0
    %1885 = vdwg.mxu0
    %1886 = vmatpush.bf16.msra.mxu0 %v1253
    %1887 = vmatpush.bf16.msra.mxu0 %v1249
    %1888 = vmatpush.bf16.msra.mxu0 %v1245
    %1889 = vmatpush.bf16.msra.mxu0 %v1241
    %1890 = vmatpush.bf16.msra.mxu0 %v1237
    %1891 = vmatpush.bf16.msra.mxu0 %v1233
    %1892 = vmatpush.bf16.msra.mxu0 %v1229
    %1893 = vmatpush.bf16.msra.mxu0 %v1225
    %1894 = vmatmul.bf16.gmra.mxu0 %v346
    %v1895 = vpop.f32.mrf.mxu0
    %v1896 = vadd.f32 %v1883, %v1895
    %v1897 = vpop.f32.mrf.mxu0
    %1898 = vdwg.mxu0
    %1899 = vmatpush.bf16.msra.mxu0 %v1285
    %1900 = vmatpush.bf16.msra.mxu0 %v1281
    %1901 = vmatpush.bf16.msra.mxu0 %v1277
    %1902 = vmatpush.bf16.msra.mxu0 %v1273
    %1903 = vmatpush.bf16.msra.mxu0 %v1269
    %1904 = vmatpush.bf16.msra.mxu0 %v1265
    %1905 = vmatpush.bf16.msra.mxu0 %v1261
    %1906 = vmatpush.bf16.msra.mxu0 %v1257
    %1907 = vmatmul.bf16.gmra.mxu0 %v347
    %v1908 = vpop.f32.mrf.mxu0
    %v1909 = vadd.f32 %v1896, %v1908
    %v1910 = vpop.f32.mrf.mxu0
    %1911 = vdwg.mxu0
    %1912 = vmatpush.bf16.msra.mxu0 %v1317
    %1913 = vmatpush.bf16.msra.mxu0 %v1313
    %1914 = vmatpush.bf16.msra.mxu0 %v1309
    %1915 = vmatpush.bf16.msra.mxu0 %v1305
    %1916 = vmatpush.bf16.msra.mxu0 %v1301
    %1917 = vmatpush.bf16.msra.mxu0 %v1297
    %1918 = vmatpush.bf16.msra.mxu0 %v1293
    %1919 = vmatpush.bf16.msra.mxu0 %v1289
    %1920 = vmatmul.bf16.gmra.mxu0 %v348
    %v1921 = vpop.f32.mrf.mxu0
    %v1922 = vadd.f32 %v1909, %v1921
    %v1923 = vpop.f32.mrf.mxu0
    %1924 = vdwg.mxu0
    %1925 = vmatpush.bf16.msra.mxu0 %v1349
    %1926 = vmatpush.bf16.msra.mxu0 %v1345
    %1927 = vmatpush.bf16.msra.mxu0 %v1341
    %1928 = vmatpush.bf16.msra.mxu0 %v1337
    %1929 = vmatpush.bf16.msra.mxu0 %v1333
    %1930 = vmatpush.bf16.msra.mxu0 %v1329
    %1931 = vmatpush.bf16.msra.mxu0 %v1325
    %1932 = vmatpush.bf16.msra.mxu0 %v1321
    %1933 = vmatmul.bf16.gmra.mxu0 %v349
    %v1934 = vpop.f32.mrf.mxu0
    %v1935 = vadd.f32 %v1922, %v1934
    %v1936 = vpop.f32.mrf.mxu0
    %1937 = vdwg.mxu0
    %1938 = vmatpush.bf16.msra.mxu0 %v1381
    %1939 = vmatpush.bf16.msra.mxu0 %v1377
    %1940 = vmatpush.bf16.msra.mxu0 %v1373
    %1941 = vmatpush.bf16.msra.mxu0 %v1369
    %1942 = vmatpush.bf16.msra.mxu0 %v1365
    %1943 = vmatpush.bf16.msra.mxu0 %v1361
    %1944 = vmatpush.bf16.msra.mxu0 %v1357
    %1945 = vmatpush.bf16.msra.mxu0 %v1353
    %1946 = vmatmul.bf16.gmra.mxu0 %v350
    %v1947 = vpop.f32.mrf.mxu0
    %v1948 = vadd.f32 %v1935, %v1947
    %v1949 = vpop.f32.mrf.mxu0
    %1950 = vdwg.mxu0
    %1951 = vmatpush.bf16.msra.mxu0 %v1158
    %1952 = vmatpush.bf16.msra.mxu0 %v1154
    %1953 = vmatpush.bf16.msra.mxu0 %v1150
    %1954 = vmatpush.bf16.msra.mxu0 %v1146
    %1955 = vmatpush.bf16.msra.mxu0 %v1142
    %1956 = vmatpush.bf16.msra.mxu0 %v1138
    %1957 = vmatpush.bf16.msra.mxu0 %v1134
    %1958 = vmatpush.bf16.msra.mxu0 %v1130
    %1959 = vmatmul.bf16.gmra.mxu0 %v343
    %v1960 = vpop.f32.mrf.mxu0
    %v1961 = vadd.f32 0.0, %v1960
    %v1962 = vpop.f32.mrf.mxu0
    %1963 = vdwg.mxu0
    %1964 = vmatpush.bf16.msra.mxu0 %v1190
    %1965 = vmatpush.bf16.msra.mxu0 %v1186
    %1966 = vmatpush.bf16.msra.mxu0 %v1182
    %1967 = vmatpush.bf16.msra.mxu0 %v1178
    %1968 = vmatpush.bf16.msra.mxu0 %v1174
    %1969 = vmatpush.bf16.msra.mxu0 %v1170
    %1970 = vmatpush.bf16.msra.mxu0 %v1166
    %1971 = vmatpush.bf16.msra.mxu0 %v1162
    %1972 = vmatmul.bf16.gmra.mxu0 %v344
    %v1973 = vpop.f32.mrf.mxu0
    %v1974 = vadd.f32 %v1961, %v1973
    %v1975 = vpop.f32.mrf.mxu0
    %1976 = vdwg.mxu0
    %1977 = vmatpush.bf16.msra.mxu0 %v1222
    %1978 = vmatpush.bf16.msra.mxu0 %v1218
    %1979 = vmatpush.bf16.msra.mxu0 %v1214
    %1980 = vmatpush.bf16.msra.mxu0 %v1210
    %1981 = vmatpush.bf16.msra.mxu0 %v1206
    %1982 = vmatpush.bf16.msra.mxu0 %v1202
    %1983 = vmatpush.bf16.msra.mxu0 %v1198
    %1984 = vmatpush.bf16.msra.mxu0 %v1194
    %1985 = vmatmul.bf16.gmra.mxu0 %v345
    %v1986 = vpop.f32.mrf.mxu0
    %v1987 = vadd.f32 %v1974, %v1986
    %v1988 = vpop.f32.mrf.mxu0
    %1989 = vdwg.mxu0
    %1990 = vmatpush.bf16.msra.mxu0 %v1254
    %1991 = vmatpush.bf16.msra.mxu0 %v1250
    %1992 = vmatpush.bf16.msra.mxu0 %v1246
    %1993 = vmatpush.bf16.msra.mxu0 %v1242
    %1994 = vmatpush.bf16.msra.mxu0 %v1238
    %1995 = vmatpush.bf16.msra.mxu0 %v1234
    %1996 = vmatpush.bf16.msra.mxu0 %v1230
    %1997 = vmatpush.bf16.msra.mxu0 %v1226
    %1998 = vmatmul.bf16.gmra.mxu0 %v346
    %v1999 = vpop.f32.mrf.mxu0
    %v2000 = vadd.f32 %v1987, %v1999
    %v2001 = vpop.f32.mrf.mxu0
    %2002 = vdwg.mxu0
    %2003 = vmatpush.bf16.msra.mxu0 %v1286
    %2004 = vmatpush.bf16.msra.mxu0 %v1282
    %2005 = vmatpush.bf16.msra.mxu0 %v1278
    %2006 = vmatpush.bf16.msra.mxu0 %v1274
    %2007 = vmatpush.bf16.msra.mxu0 %v1270
    %2008 = vmatpush.bf16.msra.mxu0 %v1266
    %2009 = vmatpush.bf16.msra.mxu0 %v1262
    %2010 = vmatpush.bf16.msra.mxu0 %v1258
    %2011 = vmatmul.bf16.gmra.mxu0 %v347
    %v2012 = vpop.f32.mrf.mxu0
    %v2013 = vadd.f32 %v2000, %v2012
    %v2014 = vpop.f32.mrf.mxu0
    %2015 = vdwg.mxu0
    %2016 = vmatpush.bf16.msra.mxu0 %v1318
    %2017 = vmatpush.bf16.msra.mxu0 %v1314
    %2018 = vmatpush.bf16.msra.mxu0 %v1310
    %2019 = vmatpush.bf16.msra.mxu0 %v1306
    %2020 = vmatpush.bf16.msra.mxu0 %v1302
    %2021 = vmatpush.bf16.msra.mxu0 %v1298
    %2022 = vmatpush.bf16.msra.mxu0 %v1294
    %2023 = vmatpush.bf16.msra.mxu0 %v1290
    %2024 = vmatmul.bf16.gmra.mxu0 %v348
    %v2025 = vpop.f32.mrf.mxu0
    %v2026 = vadd.f32 %v2013, %v2025
    %v2027 = vpop.f32.mrf.mxu0
    %2028 = vdwg.mxu0
    %2029 = vmatpush.bf16.msra.mxu0 %v1350
    %2030 = vmatpush.bf16.msra.mxu0 %v1346
    %2031 = vmatpush.bf16.msra.mxu0 %v1342
    %2032 = vmatpush.bf16.msra.mxu0 %v1338
    %2033 = vmatpush.bf16.msra.mxu0 %v1334
    %2034 = vmatpush.bf16.msra.mxu0 %v1330
    %2035 = vmatpush.bf16.msra.mxu0 %v1326
    %2036 = vmatpush.bf16.msra.mxu0 %v1322
    %2037 = vmatmul.bf16.gmra.mxu0 %v349
    %v2038 = vpop.f32.mrf.mxu0
    %v2039 = vadd.f32 %v2026, %v2038
    %v2040 = vpop.f32.mrf.mxu0
    %2041 = vdwg.mxu0
    %2042 = vmatpush.bf16.msra.mxu0 %v1382
    %2043 = vmatpush.bf16.msra.mxu0 %v1378
    %2044 = vmatpush.bf16.msra.mxu0 %v1374
    %2045 = vmatpush.bf16.msra.mxu0 %v1370
    %2046 = vmatpush.bf16.msra.mxu0 %v1366
    %2047 = vmatpush.bf16.msra.mxu0 %v1362
    %2048 = vmatpush.bf16.msra.mxu0 %v1358
    %2049 = vmatpush.bf16.msra.mxu0 %v1354
    %2050 = vmatmul.bf16.gmra.mxu0 %v350
    %v2051 = vpop.f32.mrf.mxu0
    %v2052 = vadd.f32 %v2039, %v2051
    %v2053 = vpop.f32.mrf.mxu0
    %2054 = vdwg.mxu0
    %v2055 = vadd.f32 %v67, %v1740
    %v2056 = vadd.f32 %v68, %v1844
    %v2057 = vadd.f32 %v69, %v1948
    %v2058 = vadd.f32 %v70, %v2052
    %2059 = vst [vmem:[#allocation2] sm:$0xff] %v2055
    %2060 = vst [vmem:[#allocation2 + $0x8] sm:$0xff] %v2056
    %2061 = vst [vmem:[#allocation2 + $0x10] sm:$0xff] %v2057
    %2062 = vst [vmem:[#allocation2 + $0x18] sm:$0xff] %v2058
    // Predicated region
    $region42: #{_lambda_.1} parent=1 // pred_check
      %p2063 = pneg %p59
    $region43: #{_lambda_.1} parent=1 // pred_check_branch
      %2065 = sbr.rel (%p2063) target = $region45
    $region44: #{_lambda_.1} parent=1 // pred_region
      %v2066 = vld [vmem:[#allocation2] sm:$0xff]
      %v2067 = vld [vmem:[#allocation2 + $0x8] sm:$0xff]
      %v2068 = vld [vmem:[#allocation2 + $0x10] sm:$0xff]
      %v2069 = vld [vmem:[#allocation2 + $0x18] sm:$0xff]
      %v2070 = vld [vmem:[%s2] sm:$0xf]
      %v2072 = vperm.slane %v2070, 0
      %v2073 = vperm.slane %v2070, 1
      %v2074 = vperm.slane %v2070, 2
      %v2075 = vperm.slane %v2070, 3
      %v2080 = vadd.f32 %v2066, %v2072
      %v2081 = vadd.f32 %v2067, %v2073
      %v2082 = vadd.f32 %v2068, %v2074
      %v2083 = vadd.f32 %v2069, %v2075
      %vm2084 = vcmp.gt.f32.partialorder %v2080, 0.0
      %vm2085 = vcmp.gt.f32.partialorder %v2081, 0.0
      %vm2086 = vcmp.gt.f32.partialorder %v2082, 0.0
      %vm2087 = vcmp.gt.f32.partialorder %v2083, 0.0
      %v2088 = vmul.f32 %v2080, 0.2
      %v2089 = vmul.f32 %v2081, 0.2
      %v2090 = vmul.f32 %v2082, 0.2
      %v2091 = vmul.f32 %v2083, 0.2
      %v2092 = vsel %vm2084, %v2080, %v2088
      %v2093 = vsel %vm2085, %v2081, %v2089
      %v2094 = vsel %vm2086, %v2082, %v2090
      %v2095 = vsel %vm2087, %v2083, %v2091
      %v2096 = vpack.c.bf16 %v2092, %v2092
      %v2097 = vpack.c.bf16 %v2093, %v2093
      %v2098 = vpack.c.bf16 %v2094, %v2094
      %v2099 = vpack.c.bf16 %v2095, %v2095
      %v2100 = vld [vmem:[#allocation6] sm:$0xff]
      %v2101 = vld [vmem:[#allocation6 + $0x8] sm:$0xff]
      %v2102 = vld [vmem:[#allocation6 + $0x10] sm:$0xff]
      %v2103 = vld [vmem:[#allocation6 + $0x18] sm:$0xff]
      %v2104 = vld [vmem:[#allocation6 + $0x20] sm:$0xff]
      %v2105 = vld [vmem:[#allocation6 + $0x28] sm:$0xff]
      %v2106 = vld [vmem:[#allocation6 + $0x30] sm:$0xff]
      %v2107 = vld [vmem:[#allocation6 + $0x38] sm:$0xff]
      %v2108 = vld [vmem:[#allocation6 + $0x40] sm:$0xff]
      %v2109 = vld [vmem:[#allocation6 + $0x48] sm:$0xff]
      %v2110 = vld [vmem:[#allocation6 + $0x50] sm:$0xff]
      %v2111 = vld [vmem:[#allocation6 + $0x58] sm:$0xff]
      %v2112 = vld [vmem:[#allocation6 + $0x60] sm:$0xff]
      %v2113 = vld [vmem:[#allocation6 + $0x68] sm:$0xff]
      %v2114 = vld [vmem:[#allocation6 + $0x70] sm:$0xff]
      %v2115 = vld [vmem:[#allocation6 + $0x78] sm:$0xff]
      %v2116 = vld [vmem:[#allocation6 + $0x80] sm:$0xff]
      %v2117 = vld [vmem:[#allocation6 + $0x88] sm:$0xff]
      %v2118 = vld [vmem:[#allocation6 + $0x90] sm:$0xff]
      %v2119 = vld [vmem:[#allocation6 + $0x98] sm:$0xff]
      %v2120 = vld [vmem:[#allocation6 + $0xa0] sm:$0xff]
      %v2121 = vld [vmem:[#allocation6 + $0xa8] sm:$0xff]
      %v2122 = vld [vmem:[#allocation6 + $0xb0] sm:$0xff]
      %v2123 = vld [vmem:[#allocation6 + $0xb8] sm:$0xff]
      %v2124 = vld [vmem:[#allocation6 + $0xc0] sm:$0xff]
      %v2125 = vld [vmem:[#allocation6 + $0xc8] sm:$0xff]
      %v2126 = vld [vmem:[#allocation6 + $0xd0] sm:$0xff]
      %v2127 = vld [vmem:[#allocation6 + $0xd8] sm:$0xff]
      %v2128 = vld [vmem:[#allocation6 + $0xe0] sm:$0xff]
      %v2129 = vld [vmem:[#allocation6 + $0xe8] sm:$0xff]
      %v2130 = vld [vmem:[#allocation6 + $0xf0] sm:$0xff]
      %v2131 = vld [vmem:[#allocation6 + $0xf8] sm:$0xff]
      %v2132 = vld [vmem:[#allocation6 + $0x100] sm:$0xff]
      %v2133 = vld [vmem:[#allocation6 + $0x108] sm:$0xff]
      %v2134 = vld [vmem:[#allocation6 + $0x110] sm:$0xff]
      %v2135 = vld [vmem:[#allocation6 + $0x118] sm:$0xff]
      %v2136 = vld [vmem:[#allocation6 + $0x120] sm:$0xff]
      %v2137 = vld [vmem:[#allocation6 + $0x128] sm:$0xff]
      %v2138 = vld [vmem:[#allocation6 + $0x130] sm:$0xff]
      %v2139 = vld [vmem:[#allocation6 + $0x138] sm:$0xff]
      %v2140 = vld [vmem:[#allocation6 + $0x140] sm:$0xff]
      %v2141 = vld [vmem:[#allocation6 + $0x148] sm:$0xff]
      %v2142 = vld [vmem:[#allocation6 + $0x150] sm:$0xff]
      %v2143 = vld [vmem:[#allocation6 + $0x158] sm:$0xff]
      %v2144 = vld [vmem:[#allocation6 + $0x160] sm:$0xff]
      %v2145 = vld [vmem:[#allocation6 + $0x168] sm:$0xff]
      %v2146 = vld [vmem:[#allocation6 + $0x170] sm:$0xff]
      %v2147 = vld [vmem:[#allocation6 + $0x178] sm:$0xff]
      %v2148 = vld [vmem:[#allocation6 + $0x180] sm:$0xff]
      %v2149 = vld [vmem:[#allocation6 + $0x188] sm:$0xff]
      %v2150 = vld [vmem:[#allocation6 + $0x190] sm:$0xff]
      %v2151 = vld [vmem:[#allocation6 + $0x198] sm:$0xff]
      %v2152 = vld [vmem:[#allocation6 + $0x1a0] sm:$0xff]
      %v2153 = vld [vmem:[#allocation6 + $0x1a8] sm:$0xff]
      %v2154 = vld [vmem:[#allocation6 + $0x1b0] sm:$0xff]
      %v2155 = vld [vmem:[#allocation6 + $0x1b8] sm:$0xff]
      %v2156 = vld [vmem:[#allocation6 + $0x1c0] sm:$0xff]
      %v2157 = vld [vmem:[#allocation6 + $0x1c8] sm:$0xff]
      %v2158 = vld [vmem:[#allocation6 + $0x1d0] sm:$0xff]
      %v2159 = vld [vmem:[#allocation6 + $0x1d8] sm:$0xff]
      %v2160 = vld [vmem:[#allocation6 + $0x1e0] sm:$0xff]
      %v2161 = vld [vmem:[#allocation6 + $0x1e8] sm:$0xff]
      %v2162 = vld [vmem:[#allocation6 + $0x1f0] sm:$0xff]
      %v2163 = vld [vmem:[#allocation6 + $0x1f8] sm:$0xff]
      %v2164 = vld [vmem:[%s4] sm:$0x3]
      %v2166 = vperm.slane %v2164, 0
      %v2167 = vperm.slane %v2164, 1
      %v2234 = vunpack.c.l.b16 %v2100
      %v2235 = vunpack.c.h.b16 %v2100
      %v2236 = vunpack.c.l.b16 %v2101
      %v2237 = vunpack.c.h.b16 %v2101
      %v2238 = vunpack.c.l.b16 %v2102
      %v2239 = vunpack.c.h.b16 %v2102
      %v2240 = vunpack.c.l.b16 %v2103
      %v2241 = vunpack.c.h.b16 %v2103
      %v2242 = vunpack.c.l.b16 %v2104
      %v2243 = vunpack.c.h.b16 %v2104
      %v2244 = vunpack.c.l.b16 %v2105
      %v2245 = vunpack.c.h.b16 %v2105
      %v2246 = vunpack.c.l.b16 %v2106
      %v2247 = vunpack.c.h.b16 %v2106
      %v2248 = vunpack.c.l.b16 %v2107
      %v2249 = vunpack.c.h.b16 %v2107
      %v2250 = vunpack.c.l.b16 %v2108
      %v2251 = vunpack.c.h.b16 %v2108
      %v2252 = vunpack.c.l.b16 %v2109
      %v2253 = vunpack.c.h.b16 %v2109
      %v2254 = vunpack.c.l.b16 %v2110
      %v2255 = vunpack.c.h.b16 %v2110
      %v2256 = vunpack.c.l.b16 %v2111
      %v2257 = vunpack.c.h.b16 %v2111
      %v2258 = vunpack.c.l.b16 %v2112
      %v2259 = vunpack.c.h.b16 %v2112
      %v2260 = vunpack.c.l.b16 %v2113
      %v2261 = vunpack.c.h.b16 %v2113
      %v2262 = vunpack.c.l.b16 %v2114
      %v2263 = vunpack.c.h.b16 %v2114
      %v2264 = vunpack.c.l.b16 %v2115
      %v2265 = vunpack.c.h.b16 %v2115
      %v2266 = vunpack.c.l.b16 %v2116
      %v2267 = vunpack.c.h.b16 %v2116
      %v2268 = vunpack.c.l.b16 %v2117
      %v2269 = vunpack.c.h.b16 %v2117
      %v2270 = vunpack.c.l.b16 %v2118
      %v2271 = vunpack.c.h.b16 %v2118
      %v2272 = vunpack.c.l.b16 %v2119
      %v2273 = vunpack.c.h.b16 %v2119
      %v2274 = vunpack.c.l.b16 %v2120
      %v2275 = vunpack.c.h.b16 %v2120
      %v2276 = vunpack.c.l.b16 %v2121
      %v2277 = vunpack.c.h.b16 %v2121
      %v2278 = vunpack.c.l.b16 %v2122
      %v2279 = vunpack.c.h.b16 %v2122
      %v2280 = vunpack.c.l.b16 %v2123
      %v2281 = vunpack.c.h.b16 %v2123
      %v2282 = vunpack.c.l.b16 %v2124
      %v2283 = vunpack.c.h.b16 %v2124
      %v2284 = vunpack.c.l.b16 %v2125
      %v2285 = vunpack.c.h.b16 %v2125
      %v2286 = vunpack.c.l.b16 %v2126
      %v2287 = vunpack.c.h.b16 %v2126
      %v2288 = vunpack.c.l.b16 %v2127
      %v2289 = vunpack.c.h.b16 %v2127
      %v2290 = vunpack.c.l.b16 %v2128
      %v2291 = vunpack.c.h.b16 %v2128
      %v2292 = vunpack.c.l.b16 %v2129
      %v2293 = vunpack.c.h.b16 %v2129
      %v2294 = vunpack.c.l.b16 %v2130
      %v2295 = vunpack.c.h.b16 %v2130
      %v2296 = vunpack.c.l.b16 %v2131
      %v2297 = vunpack.c.h.b16 %v2131
      %v2298 = vunpack.c.l.b16 %v2132
      %v2299 = vunpack.c.h.b16 %v2132
      %v2300 = vunpack.c.l.b16 %v2133
      %v2301 = vunpack.c.h.b16 %v2133
      %v2302 = vunpack.c.l.b16 %v2134
      %v2303 = vunpack.c.h.b16 %v2134
      %v2304 = vunpack.c.l.b16 %v2135
      %v2305 = vunpack.c.h.b16 %v2135
      %v2306 = vunpack.c.l.b16 %v2136
      %v2307 = vunpack.c.h.b16 %v2136
      %v2308 = vunpack.c.l.b16 %v2137
      %v2309 = vunpack.c.h.b16 %v2137
      %v2310 = vunpack.c.l.b16 %v2138
      %v2311 = vunpack.c.h.b16 %v2138
      %v2312 = vunpack.c.l.b16 %v2139
      %v2313 = vunpack.c.h.b16 %v2139
      %v2314 = vunpack.c.l.b16 %v2140
      %v2315 = vunpack.c.h.b16 %v2140
      %v2316 = vunpack.c.l.b16 %v2141
      %v2317 = vunpack.c.h.b16 %v2141
      %v2318 = vunpack.c.l.b16 %v2142
      %v2319 = vunpack.c.h.b16 %v2142
      %v2320 = vunpack.c.l.b16 %v2143
      %v2321 = vunpack.c.h.b16 %v2143
      %v2322 = vunpack.c.l.b16 %v2144
      %v2323 = vunpack.c.h.b16 %v2144
      %v2324 = vunpack.c.l.b16 %v2145
      %v2325 = vunpack.c.h.b16 %v2145
      %v2326 = vunpack.c.l.b16 %v2146
      %v2327 = vunpack.c.h.b16 %v2146
      %v2328 = vunpack.c.l.b16 %v2147
      %v2329 = vunpack.c.h.b16 %v2147
      %v2330 = vunpack.c.l.b16 %v2148
      %v2331 = vunpack.c.h.b16 %v2148
      %v2332 = vunpack.c.l.b16 %v2149
      %v2333 = vunpack.c.h.b16 %v2149
      %v2334 = vunpack.c.l.b16 %v2150
      %v2335 = vunpack.c.h.b16 %v2150
      %v2336 = vunpack.c.l.b16 %v2151
      %v2337 = vunpack.c.h.b16 %v2151
      %v2338 = vunpack.c.l.b16 %v2152
      %v2339 = vunpack.c.h.b16 %v2152
      %v2340 = vunpack.c.l.b16 %v2153
      %v2341 = vunpack.c.h.b16 %v2153
      %v2342 = vunpack.c.l.b16 %v2154
      %v2343 = vunpack.c.h.b16 %v2154
      %v2344 = vunpack.c.l.b16 %v2155
      %v2345 = vunpack.c.h.b16 %v2155
      %v2346 = vunpack.c.l.b16 %v2156
      %v2347 = vunpack.c.h.b16 %v2156
      %v2348 = vunpack.c.l.b16 %v2157
      %v2349 = vunpack.c.h.b16 %v2157
      %v2350 = vunpack.c.l.b16 %v2158
      %v2351 = vunpack.c.h.b16 %v2158
      %v2352 = vunpack.c.l.b16 %v2159
      %v2353 = vunpack.c.h.b16 %v2159
      %v2354 = vunpack.c.l.b16 %v2160
      %v2355 = vunpack.c.h.b16 %v2160
      %v2356 = vunpack.c.l.b16 %v2161
      %v2357 = vunpack.c.h.b16 %v2161
      %v2358 = vunpack.c.l.b16 %v2162
      %v2359 = vunpack.c.h.b16 %v2162
      %v2360 = vunpack.c.l.b16 %v2163
      %v2361 = vunpack.c.h.b16 %v2163
      %v2362 = vpack.c.b16 %v2236, %v2234
      %v2363 = vpack.c.b16 %v2237, %v2235
      %v2364 = vpack.c.b16 %v2240, %v2238
      %v2365 = vpack.c.b16 %v2241, %v2239
      %v2366 = vpack.c.b16 %v2244, %v2242
      %v2367 = vpack.c.b16 %v2245, %v2243
      %v2368 = vpack.c.b16 %v2248, %v2246
      %v2369 = vpack.c.b16 %v2249, %v2247
      %v2370 = vpack.c.b16 %v2252, %v2250
      %v2371 = vpack.c.b16 %v2253, %v2251
      %v2372 = vpack.c.b16 %v2256, %v2254
      %v2373 = vpack.c.b16 %v2257, %v2255
      %v2374 = vpack.c.b16 %v2260, %v2258
      %v2375 = vpack.c.b16 %v2261, %v2259
      %v2376 = vpack.c.b16 %v2264, %v2262
      %v2377 = vpack.c.b16 %v2265, %v2263
      %v2378 = vpack.c.b16 %v2268, %v2266
      %v2379 = vpack.c.b16 %v2269, %v2267
      %v2380 = vpack.c.b16 %v2272, %v2270
      %v2381 = vpack.c.b16 %v2273, %v2271
      %v2382 = vpack.c.b16 %v2276, %v2274
      %v2383 = vpack.c.b16 %v2277, %v2275
      %v2384 = vpack.c.b16 %v2280, %v2278
      %v2385 = vpack.c.b16 %v2281, %v2279
      %v2386 = vpack.c.b16 %v2284, %v2282
      %v2387 = vpack.c.b16 %v2285, %v2283
      %v2388 = vpack.c.b16 %v2288, %v2286
      %v2389 = vpack.c.b16 %v2289, %v2287
      %v2390 = vpack.c.b16 %v2292, %v2290
      %v2391 = vpack.c.b16 %v2293, %v2291
      %v2392 = vpack.c.b16 %v2296, %v2294
      %v2393 = vpack.c.b16 %v2297, %v2295
      %v2394 = vpack.c.b16 %v2300, %v2298
      %v2395 = vpack.c.b16 %v2301, %v2299
      %v2396 = vpack.c.b16 %v2304, %v2302
      %v2397 = vpack.c.b16 %v2305, %v2303
      %v2398 = vpack.c.b16 %v2308, %v2306
      %v2399 = vpack.c.b16 %v2309, %v2307
      %v2400 = vpack.c.b16 %v2312, %v2310
      %v2401 = vpack.c.b16 %v2313, %v2311
      %v2402 = vpack.c.b16 %v2316, %v2314
      %v2403 = vpack.c.b16 %v2317, %v2315
      %v2404 = vpack.c.b16 %v2320, %v2318
      %v2405 = vpack.c.b16 %v2321, %v2319
      %v2406 = vpack.c.b16 %v2324, %v2322
      %v2407 = vpack.c.b16 %v2325, %v2323
      %v2408 = vpack.c.b16 %v2328, %v2326
      %v2409 = vpack.c.b16 %v2329, %v2327
      %v2410 = vpack.c.b16 %v2332, %v2330
      %v2411 = vpack.c.b16 %v2333, %v2331
      %v2412 = vpack.c.b16 %v2336, %v2334
      %v2413 = vpack.c.b16 %v2337, %v2335
      %v2414 = vpack.c.b16 %v2340, %v2338
      %v2415 = vpack.c.b16 %v2341, %v2339
      %v2416 = vpack.c.b16 %v2344, %v2342
      %v2417 = vpack.c.b16 %v2345, %v2343
      %v2418 = vpack.c.b16 %v2348, %v2346
      %v2419 = vpack.c.b16 %v2349, %v2347
      %v2420 = vpack.c.b16 %v2352, %v2350
      %v2421 = vpack.c.b16 %v2353, %v2351
      %v2422 = vpack.c.b16 %v2356, %v2354
      %v2423 = vpack.c.b16 %v2357, %v2355
      %v2424 = vpack.c.b16 %v2360, %v2358
      %v2425 = vpack.c.b16 %v2361, %v2359
      %2490 = vmatpush.bf16.msra.mxu0 %v2376
      %2491 = vmatpush.bf16.msra.mxu0 %v2374
      %2492 = vmatpush.bf16.msra.mxu0 %v2372
      %2493 = vmatpush.bf16.msra.mxu0 %v2370
      %2494 = vmatpush.bf16.msra.mxu0 %v2368
      %2495 = vmatpush.bf16.msra.mxu0 %v2366
      %2496 = vmatpush.bf16.msra.mxu0 %v2364
      %2497 = vmatpush.bf16.msra.mxu0 %v2362
      %2498 = vmatmul.bf16.gmra.mxu0 %v2096
      %v2499 = vpop.f32.mrf.mxu0
      %v2500 = vadd.f32 %v2166, %v2499
      %v2501 = vpop.f32.mrf.mxu0
      %2502 = vdwg.mxu0
      %2503 = vmatpush.bf16.msra.mxu0 %v2392
      %2504 = vmatpush.bf16.msra.mxu0 %v2390
      %2505 = vmatpush.bf16.msra.mxu0 %v2388
      %2506 = vmatpush.bf16.msra.mxu0 %v2386
      %2507 = vmatpush.bf16.msra.mxu0 %v2384
      %2508 = vmatpush.bf16.msra.mxu0 %v2382
      %2509 = vmatpush.bf16.msra.mxu0 %v2380
      %2510 = vmatpush.bf16.msra.mxu0 %v2378
      %2511 = vmatmul.bf16.gmra.mxu0 %v2097
      %v2512 = vpop.f32.mrf.mxu0
      %v2513 = vadd.f32 %v2500, %v2512
      %v2514 = vpop.f32.mrf.mxu0
      %2515 = vdwg.mxu0
      %2516 = vmatpush.bf16.msra.mxu0 %v2408
      %2517 = vmatpush.bf16.msra.mxu0 %v2406
      %2518 = vmatpush.bf16.msra.mxu0 %v2404
      %2519 = vmatpush.bf16.msra.mxu0 %v2402
      %2520 = vmatpush.bf16.msra.mxu0 %v2400
      %2521 = vmatpush.bf16.msra.mxu0 %v2398
      %2522 = vmatpush.bf16.msra.mxu0 %v2396
      %2523 = vmatpush.bf16.msra.mxu0 %v2394
      %2524 = vmatmul.bf16.gmra.mxu0 %v2098
      %v2525 = vpop.f32.mrf.mxu0
      %v2526 = vadd.f32 %v2513, %v2525
      %v2527 = vpop.f32.mrf.mxu0
      %2528 = vdwg.mxu0
      %2529 = vmatpush.bf16.msra.mxu0 %v2424
      %2530 = vmatpush.bf16.msra.mxu0 %v2422
      %2531 = vmatpush.bf16.msra.mxu0 %v2420
      %2532 = vmatpush.bf16.msra.mxu0 %v2418
      %2533 = vmatpush.bf16.msra.mxu0 %v2416
      %2534 = vmatpush.bf16.msra.mxu0 %v2414
      %2535 = vmatpush.bf16.msra.mxu0 %v2412
      %2536 = vmatpush.bf16.msra.mxu0 %v2410
      %2537 = vmatmul.bf16.gmra.mxu0 %v2099
      %v2538 = vpop.f32.mrf.mxu0
      %v2539 = vadd.f32 %v2526, %v2538
      %v2540 = vpop.f32.mrf.mxu0
      %2541 = vdwg.mxu0
      %2542 = vmatpush.bf16.msra.mxu0 %v2377
      %2543 = vmatpush.bf16.msra.mxu0 %v2375
      %2544 = vmatpush.bf16.msra.mxu0 %v2373
      %2545 = vmatpush.bf16.msra.mxu0 %v2371
      %2546 = vmatpush.bf16.msra.mxu0 %v2369
      %2547 = vmatpush.bf16.msra.mxu0 %v2367
      %2548 = vmatpush.bf16.msra.mxu0 %v2365
      %2549 = vmatpush.bf16.msra.mxu0 %v2363
      %2550 = vmatmul.bf16.gmra.mxu0 %v2096
      %v2551 = vpop.f32.mrf.mxu0
      %v2552 = vadd.f32 %v2167, %v2551
      %v2553 = vpop.f32.mrf.mxu0
      %2554 = vdwg.mxu0
      %2555 = vmatpush.bf16.msra.mxu0 %v2393
      %2556 = vmatpush.bf16.msra.mxu0 %v2391
      %2557 = vmatpush.bf16.msra.mxu0 %v2389
      %2558 = vmatpush.bf16.msra.mxu0 %v2387
      %2559 = vmatpush.bf16.msra.mxu0 %v2385
      %2560 = vmatpush.bf16.msra.mxu0 %v2383
      %2561 = vmatpush.bf16.msra.mxu0 %v2381
      %2562 = vmatpush.bf16.msra.mxu0 %v2379
      %2563 = vmatmul.bf16.gmra.mxu0 %v2097
      %v2564 = vpop.f32.mrf.mxu0
      %v2565 = vadd.f32 %v2552, %v2564
      %v2566 = vpop.f32.mrf.mxu0
      %2567 = vdwg.mxu0
      %2568 = vmatpush.bf16.msra.mxu0 %v2409
      %2569 = vmatpush.bf16.msra.mxu0 %v2407
      %2570 = vmatpush.bf16.msra.mxu0 %v2405
      %2571 = vmatpush.bf16.msra.mxu0 %v2403
      %2572 = vmatpush.bf16.msra.mxu0 %v2401
      %2573 = vmatpush.bf16.msra.mxu0 %v2399
      %2574 = vmatpush.bf16.msra.mxu0 %v2397
      %2575 = vmatpush.bf16.msra.mxu0 %v2395
      %2576 = vmatmul.bf16.gmra.mxu0 %v2098
      %v2577 = vpop.f32.mrf.mxu0
      %v2578 = vadd.f32 %v2565, %v2577
      %v2579 = vpop.f32.mrf.mxu0
      %2580 = vdwg.mxu0
      %2581 = vmatpush.bf16.msra.mxu0 %v2425
      %2582 = vmatpush.bf16.msra.mxu0 %v2423
      %2583 = vmatpush.bf16.msra.mxu0 %v2421
      %2584 = vmatpush.bf16.msra.mxu0 %v2419
      %2585 = vmatpush.bf16.msra.mxu0 %v2417
      %2586 = vmatpush.bf16.msra.mxu0 %v2415
      %2587 = vmatpush.bf16.msra.mxu0 %v2413
      %2588 = vmatpush.bf16.msra.mxu0 %v2411
      %2589 = vmatmul.bf16.gmra.mxu0 %v2099
      %v2590 = vpop.f32.mrf.mxu0
      %v2591 = vadd.f32 %v2578, %v2590
      %v2592 = vpop.f32.mrf.mxu0
      %2593 = vdwg.mxu0
      %vm2594 = vcmp.gt.f32.partialorder %v2539, 0.0
      %vm2595 = vcmp.gt.f32.partialorder %v2591, 0.0
      %v2596 = vmul.f32 %v2539, 0.2
      %v2597 = vmul.f32 %v2591, 0.2
      %v2598 = vsel %vm2594, %v2539, %v2596
      %v2599 = vsel %vm2595, %v2591, %v2597
      %v2600 = vld [vmem:[%s5] sm:$0x3]
      %v2602 = vperm.slane %v2600, 0
      %v2603 = vperm.slane %v2600, 1
      %v2606 = vmul.f32 %v2598, %v2602
      %v2607 = vmul.f32 %v2599, %v2603
      %v2608 = vadd.f32 %v2606, %v2607
      %2609 = vadd.xlane.f32.xlu0 %v2608
      %v2610 = vpop.xlane.xlu0 %2609
      %s2611 = sld [smem:[#allocation3]]
      %v2612 = vstv %s2611
      %v2613 = vadd.f32 %v2610, %v2612
      %v2614 = vxor.u32 %v2613, 2147483648
      %v2615 = vmul.f32 %v2614, 1.442695
      %v2616 = vpow.pop %v2615
      %v2617 = vadd.f32 %v2616, 1.0
      %v2618 = vrcp.pop %v2617
      %v2619 = vmul.f32 %v2617, %v2618
      %v2620 = vsub.f32 1.0, %v2619
      %v2621 = vmul.f32 %v2618, %v2620
      %v2622 = vadd.f32 %v2618, %v2621
      %vm2623 = vweird.f32 %v2617
      %vm2624 = vweird.f32 %v2618
      %vm2625 = vmor %vm2623, %vm2624
      %v2626 = vsel %vm2625, %v2618, %v2622
      %v2627 = vand.u32 2147483647, %v2617
      %vm2628 = vcmp.eq.f32.partialorder %v2627, 8.507059e+37
      %v2629 = vand.u32 %v2617, 2147483648
      %v2630 = vor.u32 1.1754944e-38, %v2629
      %v2631 = vsel %vm2628, %v2630, %v2626
      %v2632 = vmul.f32 1.0, %v2631
      %2633 = vst [vmem:[%s7] sm:$0xff] %v2632
    $region45: #{_lambda_.1} parent=1 // pred_fallthru
      _
    // Predicated region
    $region46: #{_lambda_.1} parent=1 // pred_check
      _
    $region47: #{_lambda_.1} parent=1 // pred_check_branch
      %2635 = sbr.rel (0) target = $region49
    $region48: #{_lambda_.1} parent=1 // pred_region
      _
    $region49: #{_lambda_.1} parent=1 // pred_fallthru
      _
    // Predicated region
    $region50: #{_lambda_.1} parent=1 // pred_check
      _
    $region51: #{_lambda_.1} parent=1 // pred_check_branch
      %2637 = sbr.rel (0) target = $region53
    $region52: #{_lambda_.1} parent=1 // pred_region
      _
    $region53: #{_lambda_.1} parent=1 // pred_fallthru
      _
    %2638 = vsyncpa [#allocation5], 1
    %2639 = vsyncpa [#allocation7], 1

</llo_original>
